<compile_context>
chip_gen: v6e
topology: v6e:2x2x1
jax: 0.10.0
libtpu: 0.0.40
codegen_flags: <defaults>
</compile_context>

<pallas_src>
import functools

import jax
import jax.numpy as jnp
from jax import lax
from jax.experimental import pallas as pl
from jax.experimental.pallas import tpu as pltpu

EPS = 1e-5


def _round_up(x, m):
    return (x + m - 1) // m * m


def _vmem_limit_bytes():
    # Generation-aware scoped-VMEM limit: <= 3/4 of physical (v7x only has
    # 64 MiB per TensorCore), never above 96 MiB, never below 16 MiB.
    try:
        info = pltpu.get_tpu_info()
        cap = int(getattr(info, "vmem_capacity_bytes", 64 * 1024 * 1024))
    except Exception:
        cap = 64 * 1024 * 1024
    return max(16 * 1024 * 1024, min((cap * 3) // 4, 96 * 1024 * 1024))


_VMEM_LIMIT = _vmem_limit_bytes()


def _choose_tk(kp):
    # Largest K tile (multiple of 128, <=512) that divides the padded K.
    for cand in (512, 384, 256, 128):
        if kp % cand == 0:
            return cand
    return 128


# ----------------------------------------------------------------------------
# Pallas kernels
# ----------------------------------------------------------------------------

def _conv_bn_kernel(*refs, m_rows, relu, has_res):
    """Fused im2col-matmul -> BatchNorm2d(train) -> [+residual] -> [ReLU].

    grid = (Cout_tiles, K_tiles); the K (reduction) axis is innermost.
    refs = (a, w, gamma, beta, [res], out, acc_scratch).
    Rows/cols beyond the true (M, Cout) are zero-padded; BN stats use sums over
    all rows divided by the true M, so padding does not bias them.
    """
    if has_res:
        a_ref, w_ref, g_ref, beta_ref, res_ref, o_ref, acc_ref = refs
    else:
        a_ref, w_ref, g_ref, beta_ref, o_ref, acc_ref = refs
        res_ref = None

    k = pl.program_id(1)

    @pl.when(k == 0)
    def _():
        acc_ref[...] = jnp.zeros_like(acc_ref)

    acc_ref[...] += jnp.dot(a_ref[...], w_ref[...],
                            preferred_element_type=jnp.float32)

    @pl.when(k == pl.num_programs(1) - 1)
    def _():
        acc = acc_ref[...]
        inv_m = 1.0 / m_rows
        s1 = jnp.sum(acc, axis=0, keepdims=True)
        s2 = jnp.sum(acc * acc, axis=0, keepdims=True)
        mean = s1 * inv_m
        var = jnp.maximum(s2 * inv_m - mean * mean, 0.0)
        y = (acc - mean) * lax.rsqrt(var + EPS) * g_ref[...] + beta_ref[...]
        if has_res:
            y = y + res_ref[...]
        if relu:
            y = jnp.maximum(y, 0.0)
        o_ref[...] = y


def _head_kernel(x_ref, w_ref, b_ref, g_ref, beta_ref, o_ref, act_ref, *,
                 b_rows):
    """Whole projection head in one call: grid over layers, weights streamed,
    activation resident in VMEM scratch.  Each step: Linear -> BN1d -> ReLU."""
    layer = pl.program_id(0)

    @pl.when(layer == 0)
    def _():
        act_ref[...] = x_ref[...]

    z = jnp.dot(act_ref[...].astype(jnp.bfloat16), w_ref[0],
                preferred_element_type=jnp.float32) + b_ref[0]
    bp = z.shape[0]
    row_ok = lax.broadcasted_iota(jnp.int32, (bp, 1), 0) < b_rows
    zm = jnp.where(row_ok, z, 0.0)                 # padded batch rows excluded
    inv_b = 1.0 / b_rows
    mean = jnp.sum(zm, axis=0, keepdims=True) * inv_b
    var = jnp.maximum(jnp.sum(zm * zm, axis=0, keepdims=True) * inv_b
                      - mean * mean, 0.0)
    y = (z - mean) * lax.rsqrt(var + EPS) * g_ref[0] + beta_ref[0]
    y = jnp.where(row_ok, jnp.maximum(y, 0.0), 0.0)
    act_ref[...] = y
    o_ref[...] = y


def _linear_kernel(x_ref, w_ref, b_ref, o_ref):
    o_ref[...] = jnp.dot(x_ref[...].astype(jnp.bfloat16), w_ref[...],
                         preferred_element_type=jnp.float32) + b_ref[...]


# ----------------------------------------------------------------------------
# Fused conv + BN (+residual, +ReLU) wrapper
# ----------------------------------------------------------------------------

def _im2col_nhwc(x, kh, kw, stride, pad):
    """NHWC im2col, tap-major / channel-minor columns (matches weight packing)."""
    n, h, w, c = x.shape
    if pad:
        x = jnp.pad(x, ((0, 0), (pad, pad), (pad, pad), (0, 0)))
    ho = (h + 2 * pad - kh) // stride + 1
    wo = (w + 2 * pad - kw) // stride + 1
    taps = []
    for i in range(kh):
        for j in range(kw):
            taps.append(lax.slice(
                x, (0, i, j, 0),
                (n, i + (ho - 1) * stride + 1, j + (wo - 1) * stride + 1, c),
                (1, stride, stride, 1)))
    col = taps[0] if len(taps) == 1 else jnp.concatenate(taps, axis=-1)
    return col.reshape(n * ho * wo, kh * kw * c), ho, wo


def conv_bn_act(x_nhwc, cp, *, stride, pad, relu, residual=None):
    """x_nhwc: (N,H,W,Cin); cp: prepacked conv+BN params.  Returns NHWC."""
    n = x_nhwc.shape[0]
    a2d, ho, wo = _im2col_nhwc(x_nhwc, cp['kh'], cp['kw'], stride, pad)
    m, k = a2d.shape
    kp, np_, tk, tn = cp['Kp'], cp['Np'], cp['tk'], cp['tn']
    mp = _round_up(m, 16)                     # bf16 sublane packing
    a_p = jnp.zeros((mp, kp), jnp.bfloat16).at[:m, :k].set(
        a2d.astype(jnp.bfloat16))

    inputs = [a_p, cp['w'], cp['g'], cp['b']]
    in_specs = [
        pl.BlockSpec((mp, tk), lambda j, kk: (0, kk)),
        pl.BlockSpec((tk, tn), lambda j, kk: (kk, j)),
        pl.BlockSpec((1, tn), lambda j, kk: (0, j)),
        pl.BlockSpec((1, tn), lambda j, kk: (0, j)),
    ]
    has_res = residual is not None
    if has_res:
        r_p = jnp.zeros((mp, np_), jnp.float32).at[:m, :cp['Cout']].set(residual)
        inputs.append(r_p)
        in_specs.append(pl.BlockSpec((mp, tn), lambda j, kk: (0, j)))

    kernel = functools.partial(_conv_bn_kernel, m_rows=m, relu=relu,
                               has_res=has_res)
    flops = 2 * mp * kp * np_
    bytes_acc = (a_p.size * 2 + cp['w'].size * 2 + mp * np_ * 4
                 + (mp * np_ * 4 if has_res else 0))
    out = pl.pallas_call(
        kernel,
        out_shape=jax.ShapeDtypeStruct((mp, np_), jnp.float32),
        grid=(np_ // tn, kp // tk),
        in_specs=in_specs,
        out_specs=pl.BlockSpec((mp, tn), lambda j, kk: (0, j)),
        scratch_shapes=[pltpu.VMEM((mp, tn), jnp.float32)],
        compiler_params=pltpu.CompilerParams(
            dimension_semantics=("parallel", "arbitrary"),
            vmem_limit_bytes=_VMEM_LIMIT),
        cost_estimate=pl.CostEstimate(flops=int(flops), transcendentals=0,
                                      bytes_accessed=int(bytes_acc)),
    )(*inputs)
    return out[:m, :cp['Cout']].reshape(n, ho, wo, cp['Cout'])


# ----------------------------------------------------------------------------
# ResNet-18 backbone (NHWC end-to-end)
# ----------------------------------------------------------------------------

def basic_block(x, blk):
    n = x.shape[0]
    out = conv_bn_act(x, blk['c1'], stride=blk['stride'], pad=1, relu=True)
    if 'down' in blk:
        ident = conv_bn_act(x, blk['down'], stride=blk['stride'], pad=0,
                            relu=False)
    else:
        ident = x
    _, ho, wo, co = out.shape
    ident2d = ident.reshape(n * ho * wo, co)
    # conv2 -> bn2 -> (+identity) -> relu, all inside one fused kernel.
    return conv_bn_act(out, blk['c2'], stride=1, pad=1, relu=True,
                       residual=ident2d)


def resnet18_forward(rp, x_nhwc):
    x = conv_bn_act(x_nhwc, rp['stem'], stride=2, pad=3, relu=True)
    # MaxPool2d(3, stride=2, padding=1): cheap XLA glue (no Pallas needed).
    x = lax.reduce_window(x, -jnp.inf, lax.max, (1, 3, 3, 1), (1, 2, 2, 1),
                          ((0, 0), (1, 1), (1, 1), (0, 0)))
    for blk in rp['blocks']:
        x = basic_block(x, blk)
    # AdaptiveAvgPool2d((1,1)) + flatten; resnet.fc == Identity.
    return jnp.mean(x, axis=(1, 2))


# ----------------------------------------------------------------------------
# Projection head + output linear
# ----------------------------------------------------------------------------

def head_forward(hp, embeds):
    b = embeds.shape[0]
    d, nl = hp['D'], hp['L']
    bp = _round_up(max(b, 1), 16)
    x_p = jnp.zeros((bp, d), jnp.float32).at[:b, :embeds.shape[1]].set(embeds)
    kernel = functools.partial(_head_kernel, b_rows=b)
    flops = 2 * bp * d * d * nl
    bytes_acc = hp['W'].size * 2 + (hp['b'].size + hp['g'].size
                                    + hp['beta'].size + 2 * bp * d) * 4
    return pl.pallas_call(
        kernel,
        out_shape=jax.ShapeDtypeStruct((bp, d), jnp.float32),
        grid=(nl,),
        in_specs=[
            pl.BlockSpec((bp, d), lambda l: (0, 0)),
            pl.BlockSpec((1, d, d), lambda l: (l, 0, 0)),
            pl.BlockSpec((1, 1, d), lambda l: (l, 0, 0)),
            pl.BlockSpec((1, 1, d), lambda l: (l, 0, 0)),
            pl.BlockSpec((1, 1, d), lambda l: (l, 0, 0)),
        ],
        out_specs=pl.BlockSpec((bp, d), lambda l: (0, 0)),
        scratch_shapes=[pltpu.VMEM((bp, d), jnp.float32)],
        compiler_params=pltpu.CompilerParams(
            dimension_semantics=("arbitrary",),
            vmem_limit_bytes=_VMEM_LIMIT),
        cost_estimate=pl.CostEstimate(flops=int(flops), transcendentals=0,
                                      bytes_accessed=int(bytes_acc)),
    )(x_p, hp['W'], hp['b'], hp['g'], hp['beta'])


def out_forward(op, head_out, b_rows):
    bp, d = head_out.shape
    outp = op['w'].shape[1]
    logits_p = pl.pallas_call(
        _linear_kernel,
        out_shape=jax.ShapeDtypeStruct((bp, outp), jnp.float32),
        grid=(1,),
        in_specs=[pl.BlockSpec((bp, d), lambda i: (0, 0)),
                  pl.BlockSpec((d, outp), lambda i: (0, 0)),
                  pl.BlockSpec((1, outp), lambda i: (0, 0))],
        out_specs=pl.BlockSpec((bp, outp), lambda i: (0, 0)),
        compiler_params=pltpu.CompilerParams(vmem_limit_bytes=_VMEM_LIMIT),
    )(head_out, op['w'], op['b'])
    return logits_p[:b_rows, :op['num_classes']]


def projection_net_forward(params, x_nchw):
    # preNet is None for resnet18 -> skipped (matches the PyTorch branch).
    x = jnp.transpose(x_nchw.astype(jnp.float32), (0, 2, 3, 1))   # NHWC once
    embeds = resnet18_forward(params['resnet'], x)                # (N, 512)
    head_out = head_forward(params['head'], embeds)
    logits = out_forward(params['out'], head_out, x_nchw.shape[0])
    return embeds, logits


# ----------------------------------------------------------------------------
# Deterministic parameter construction (weights pre-packed for the kernels)
# ----------------------------------------------------------------------------

def _conv_init(key, cout, cin, kh, kw):
    fan_in = cin * kh * kw
    return jax.random.normal(key, (cout, cin, kh, kw),
                             jnp.float32) / jnp.sqrt(fan_in)


def _linear_init(key, out_f, in_f):
    k1, k2 = jax.random.split(key)
    w = jax.random.uniform(k1, (out_f, in_f), jnp.float32,
                           -1.0, 1.0) / jnp.sqrt(in_f)
    b = jax.random.uniform(k2, (out_f,), jnp.float32,
                           -1.0, 1.0) / jnp.sqrt(in_f)
    return w, b


def _make_conv_bn(key, cout, cin, kh, kw):
    # Pack once (hoisted out of the forward pass):
    # (Cout,Cin,kh,kw) -> (kh*kw*Cin, Cout), zero-padded, bf16, lane-dense Cout.
    w = _conv_init(key, cout, cin, kh, kw)
    k = cin * kh * kw
    kp = _round_up(k, 128)
    tk = _choose_tk(kp)
    np_ = _round_up(cout, 128)
    tn = 256 if np_ % 256 == 0 else 128
    w2 = jnp.transpose(w, (2, 3, 1, 0)).reshape(k, cout)
    wp = jnp.zeros((kp, np_), jnp.float32).at[:k, :cout].set(
        w2).astype(jnp.bfloat16)
    g = jnp.zeros((1, np_), jnp.float32).at[0, :cout].set(1.0)  # BN gamma
    b = jnp.zeros((1, np_), jnp.float32)                         # BN beta
    return {'w': wp, 'g': g, 'b': b, 'Cout': cout, 'kh': kh, 'kw': kw,
            'Kp': kp, 'tk': tk, 'Np': np_, 'tn': tn}


def make_projection_net_params(
        key,
        head_layers=(512, 512, 512, 512, 512, 512, 512, 512, 128),
        num_classes=2):
    keys = iter(jax.random.split(key, 64))

    # resnet18 backbone
    resnet = {'stem': _make_conv_bn(next(keys), 64, 3, 7, 7), 'blocks': []}
    block_cfg = [(64, 64, 1), (64, 64, 1), (64, 128, 2), (128, 128, 1),
                 (128, 256, 2), (256, 256, 1), (256, 512, 2), (512, 512, 1)]
    for cin, cout, stride in block_cfg:
        blk = {'c1': _make_conv_bn(next(keys), cout, cin, 3, 3),
               'c2': _make_conv_bn(next(keys), cout, cout, 3, 3),
               'stride': stride}
        if stride != 1 or cin != cout:
            blk['down'] = _make_conv_bn(next(keys), cout, cin, 1, 1)
        resnet['blocks'].append(blk)

    # Projection head, padded to a common width D and stacked so a single
    # pallas_call streams one layer's weights per grid step.
    dims = [512] + list(head_layers)
    d = _round_up(max(dims), 128)
    w_l, b_l, g_l, be_l = [], [], [], []
    last = 512
    for n_out in head_layers:
        w, b = _linear_init(next(keys), n_out, last)
        w_l.append(jnp.zeros((d, d), jnp.float32).at[:last, :n_out].set(w.T))
        b_l.append(jnp.zeros((1, d), jnp.float32).at[0, :n_out].set(b))
        g_l.append(jnp.zeros((1, d), jnp.float32).at[0, :n_out].set(1.0))
        be_l.append(jnp.zeros((1, d), jnp.float32))
        last = n_out
    head = {'W': jnp.stack(w_l).astype(jnp.bfloat16),   # (L, D, D)
            'b': jnp.stack(b_l), 'g': jnp.stack(g_l), 'beta': jnp.stack(be_l),
            'D': d, 'L': len(head_layers)}

    # Output linear, pre-padded/lane-dense.
    ow, ob = _linear_init(next(keys), num_classes, last)
    outp = _round_up(num_classes, 128)
    out_w = jnp.zeros((d, outp), jnp.float32).at[:last, :num_classes].set(
        ow.T).astype(jnp.bfloat16)
    out_b = jnp.zeros((1, outp), jnp.float32).at[0, :num_classes].set(ob)
    out = {'w': out_w, 'b': out_b, 'num_classes': num_classes}

    return {'resnet': resnet, 'head': head, 'out': out}


if __name__ == "__main__":
    key = jax.random.PRNGKey(0)
    k_params, k_x = jax.random.split(key)

    params = make_projection_net_params(k_params)
    x = jax.random.normal(k_x, (2, 3, 32, 32), jnp.float32)   # NCHW input

    embeds, logits = projection_net_forward(params, x)
    jax.block_until_ready((embeds, logits))

    assert embeds.shape == (2, 512), embeds.shape
    assert logits.shape == (2, 2), logits.shape
    assert bool(jnp.all(jnp.isfinite(embeds))) and bool(jnp.all(jnp.isfinite(logits)))
    print("KERNEL_OK")
</pallas_src>

<mosaic_0001>
module attributes {stable_mosaic.version = 11 : i64} {
  func.func @_conv_bn_kernel(%arg0: i32, %arg1: i32, %arg2: memref<512x256xbf16, #tpu.memory_space<vmem>>, %arg3: memref<256x128xbf16, #tpu.memory_space<vmem>>, %arg4: memref<1x128xf32, #tpu.memory_space<vmem>>, %arg5: memref<1x128xf32, #tpu.memory_space<vmem>>, %arg6: memref<512x128xf32, #tpu.memory_space<vmem>>, %arg7: memref<512x128xf32, #tpu.memory_space<vmem>>) attributes {dimension_semantics = [#tpu.dimension_semantics<parallel>, #tpu.dimension_semantics<arbitrary>], iteration_bounds = array<i64: 1, 1>, scalar_prefetch = 0 : i64, scratch_operands = 1 : i64, tpu.core_type = #tpu.core_type<tc>, window_params = [{transform_indices = @transform_0, window_bounds = array<i64: 512, 256>}, {transform_indices = @transform_1, window_bounds = array<i64: 256, 128>}, {transform_indices = @transform_2, window_bounds = array<i64: 1, 128>}, {transform_indices = @transform_3, window_bounds = array<i64: 1, 128>}, {transform_indices = @transform_4, window_bounds = array<i64: 512, 128>}]} {
    %c0_i32 = arith.constant 0 : i32
    %0 = arith.cmpi eq, %arg1, %c0_i32 : i32
    %1 = arith.extui %0 : i1 to i32
    %c0_i32_0 = arith.constant 0 : i32
    %2 = arith.cmpi ne, %1, %c0_i32_0 : i32
    scf.if %2 {
      %cst_10 = arith.constant 0.000000e+00 : f32
      %12 = vector.broadcast %cst_10 : f32 to vector<512x128xf32>
      %c0_11 = arith.constant 0 : index
      %c0_12 = arith.constant 0 : index
      %13 = vector.load %arg7[%c0_11, %c0_12] : memref<512x128xf32, #tpu.memory_space<vmem>>, vector<512x128xf32>
      tpu.vector_store %arg7[%c0_11, %c0_12], %12 {strides = array<i32>} : memref<512x128xf32, #tpu.memory_space<vmem>>, vector<512x128xf32>,
    } else {
    }
    %c0 = arith.constant 0 : index
    %c0_1 = arith.constant 0 : index
    %3 = vector.load %arg7[%c0, %c0_1] : memref<512x128xf32, #tpu.memory_space<vmem>>, vector<512x128xf32>
    %c0_2 = arith.constant 0 : index
    %c0_3 = arith.constant 0 : index
    %4 = vector.load %arg2[%c0_2, %c0_3] : memref<512x256xbf16, #tpu.memory_space<vmem>>, vector<512x256xbf16>
    %c0_4 = arith.constant 0 : index
    %c0_5 = arith.constant 0 : index
    %5 = vector.load %arg3[%c0_4, %c0_5] : memref<256x128xbf16, #tpu.memory_space<vmem>>, vector<256x128xbf16>
    %cst = arith.constant dense<0.000000e+00> : vector<512x128xf32>
    %6 = tpu.matmul %4, %5, %cst {dimension_numbers = #tpu.dot_dimension_numbers<[1], [0], [0], [1], [0, 0, 1, 1], [], []>} : vector<512x256xbf16>, vector<256x128xbf16>, vector<512x128xf32> -> vector<512x128xf32>
    %7 = arith.addf %3, %6 : vector<512x128xf32>
    %c0_6 = arith.constant 0 : index
    %c0_7 = arith.constant 0 : index
    %8 = vector.load %arg7[%c0_6, %c0_7] : memref<512x128xf32, #tpu.memory_space<vmem>>, vector<512x128xf32>
    tpu.vector_store %arg7[%c0_6, %c0_7], %7 {strides = array<i32>} : memref<512x128xf32, #tpu.memory_space<vmem>>, vector<512x128xf32>,
    %c0_i32_8 = arith.constant 0 : i32
    %9 = arith.cmpi eq, %arg1, %c0_i32_8 : i32
    %10 = arith.extui %9 : i1 to i32
    %c0_i32_9 = arith.constant 0 : i32
    %11 = arith.cmpi ne, %10, %c0_i32_9 : i32
    scf.if %11 {
      %c0_10 = arith.constant 0 : index
      %c0_11 = arith.constant 0 : index
      %12 = vector.load %arg7[%c0_10, %c0_11] : memref<512x128xf32, #tpu.memory_space<vmem>>, vector<512x128xf32>
      %cst_12 = arith.constant dense<0.000000e+00> : vector<128xf32>
      %13 = vector.multi_reduction <add>, %12, %cst_12 [0] : vector<512x128xf32> to vector<128xf32>
      %14 = vector.shape_cast %13 : vector<128xf32> to vector<1x128xf32>
      %15 = arith.mulf %12, %12 : vector<512x128xf32>
      %cst_13 = arith.constant dense<0.000000e+00> : vector<128xf32>
      %16 = vector.multi_reduction <add>, %15, %cst_13 [0] : vector<512x128xf32> to vector<128xf32>
      %17 = vector.shape_cast %16 : vector<128xf32> to vector<1x128xf32>
      %cst_14 = arith.constant 0.001953125 : f32
      %18 = vector.broadcast %cst_14 : f32 to vector<1x128xf32>
      %19 = arith.mulf %14, %18 : vector<1x128xf32>
      %cst_15 = arith.constant 0.001953125 : f32
      %20 = vector.broadcast %cst_15 : f32 to vector<1x128xf32>
      %21 = arith.mulf %17, %20 : vector<1x128xf32>
      %22 = arith.mulf %19, %19 : vector<1x128xf32>
      %23 = arith.subf %21, %22 : vector<1x128xf32>
      %cst_16 = arith.constant 0.000000e+00 : f32
      %24 = vector.broadcast %cst_16 : f32 to vector<1x128xf32>
      %25 = arith.maximumf %23, %24 : vector<1x128xf32>
      %26 = vector.broadcast %19 : vector<1x128xf32> to vector<512x128xf32>
      %27 = arith.subf %12, %26 : vector<512x128xf32>
      %cst_17 = arith.constant 9.99999974E-6 : f32
      %28 = vector.broadcast %cst_17 : f32 to vector<1x128xf32>
      %29 = arith.addf %25, %28 : vector<1x128xf32>
      %30 = math.rsqrt %29 : vector<1x128xf32>
      %31 = vector.broadcast %30 : vector<1x128xf32> to vector<512x128xf32>
      %32 = arith.mulf %27, %31 : vector<512x128xf32>
      %c0_18 = arith.constant 0 : index
      %c0_19 = arith.constant 0 : index
      %33 = vector.load %arg4[%c0_18, %c0_19] : memref<1x128xf32, #tpu.memory_space<vmem>>, vector<1x128xf32>
      %34 = vector.broadcast %33 : vector<1x128xf32> to vector<512x128xf32>
      %35 = arith.mulf %32, %34 : vector<512x128xf32>
      %c0_20 = arith.constant 0 : index
      %c0_21 = arith.constant 0 : index
      %36 = vector.load %arg5[%c0_20, %c0_21] : memref<1x128xf32, #tpu.memory_space<vmem>>, vector<1x128xf32>
      %37 = vector.broadcast %36 : vector<1x128xf32> to vector<512x128xf32>
      %38 = arith.addf %35, %37 : vector<512x128xf32>
      %cst_22 = arith.constant 0.000000e+00 : f32
      %39 = vector.broadcast %cst_22 : f32 to vector<512x128xf32>
      %40 = arith.maximumf %38, %39 : vector<512x128xf32>
      %c0_23 = arith.constant 0 : index
      %c0_24 = arith.constant 0 : index
      %41 = vector.load %arg6[%c0_23, %c0_24] : memref<512x128xf32, #tpu.memory_space<vmem>>, vector<512x128xf32>
      tpu.vector_store %arg6[%c0_23, %c0_24], %40 {strides = array<i32>} : memref<512x128xf32, #tpu.memory_space<vmem>>, vector<512x128xf32>,
    } else {
    }
    return
  }
  func.func @transform_0(%arg0: i32, %arg1: i32) -> (i32, i32) {
    %c0_i32 = arith.constant 0 : i32
    %c0_i32_0 = arith.constant 0 : i32
    return %c0_i32, %arg1 : i32, i32
  }
  func.func @transform_1(%arg0: i32, %arg1: i32) -> (i32, i32) {
    %c0_i32 = arith.constant 0 : i32
    return %arg1, %arg0 : i32, i32
  }
  func.func @transform_2(%arg0: i32, %arg1: i32) -> (i32, i32) {
    %c0_i32 = arith.constant 0 : i32
    %c0_i32_0 = arith.constant 0 : i32
    return %c0_i32, %arg0 : i32, i32
  }
  func.func @transform_3(%arg0: i32, %arg1: i32) -> (i32, i32) {
    %c0_i32 = arith.constant 0 : i32
    %c0_i32_0 = arith.constant 0 : i32
    return %c0_i32, %arg0 : i32, i32
  }
  func.func @transform_4(%arg0: i32, %arg1: i32) -> (i32, i32) {
    %c0_i32 = arith.constant 0 : i32
    %c0_i32_0 = arith.constant 0 : i32
    return %c0_i32, %arg0 : i32, i32
  }
}

</mosaic_0001>

<llo_original>
// kernel: tpu_custom_call.1
$region0: #{tpu_custom_call.1}
  #allocation0 [shape = 'u32[]', space=smem, size = 0x4, offset = 0x4, fixed_abs, tag = 'smem constant byte address 0x4 - core index']
  #allocation1 [shape = 'u32[144,128]{1,0:T(1,128)}', space=vmem, size = 0x12000, scoped, tag = 'internal scratch']
  #allocation2 [shape = 'f32[512,128]{1,0:T(8,128)}', space=vmem, size = 0x40000, scoped, tag = 'scratch operand']
  %s0 = inlined_call_operand.hbm [shape: bf16[512,256], index: 0, kind: input, shape index: {}]
  %s1 = inlined_call_operand.hbm [shape: bf16[256,128], index: 1, kind: input, shape index: {}]
  %s2 = inlined_call_operand.vmem [shape: f32[1,128], index: 2, kind: input, shape index: {}]
  %s3 = inlined_call_operand.vmem [shape: f32[1,128], index: 3, kind: input, shape index: {}]
  %s4 = inlined_call_operand.hbm [shape: f32[512,128], index: 4, kind: output, shape index: {}]
  %s5 = sld [smem:[#allocation0]]
  $region42: #{tpu_custom_call.1} parent=0
    _
  %s7 = ssub.s32 1, %s5
  %s8 = scalar_select 0, %s7, %s5
  $region1: #{tpu_custom_call.1} parent=0
    #allocation3 [shape = 'u8[262144]{0}', space=vmem, size = 0x40000, scoped, tag = 'input window, operand 0, single buffered']
    #allocation4 [shape = 's32[1]{0}', space=sflag, size = 0x4, scoped, tag = 'scoped memory for tpu_custom_call.1']
    #allocation5 [shape = 's32[1]{0}', space=sflag, size = 0x4, scoped, tag = 'scoped memory for tpu_custom_call.1']
    #allocation6 [shape = 'u8[65536]{0}', space=vmem, size = 0x10000, scoped, tag = 'input window, operand 1, single buffered']
    #allocation7 [shape = 's32[1]{0}', space=sflag, size = 0x4, scoped, tag = 'scoped memory for tpu_custom_call.1']
    #allocation8 [shape = 'u8[262144]{0}', space=vmem, size = 0x40000, scoped, tag = 'output window, operand 0, single buffered']
    %9 = vsyncpa [#allocation4], 0
    %10 = vsyncpa [#allocation7], 0
    %11 = vsyncpa [#allocation5], 0
    // Predicated region
    $region2: #{tpu_custom_call.1} parent=1 // pred_check
      _
    $region3: #{tpu_custom_call.1} parent=1 // pred_check_branch
      %13 = sbr.rel (0) target = $region5
    $region4: #{tpu_custom_call.1} parent=1 // pred_region
      %s15 = ssub.s32 8192, 8192
      %16 = vsyncadd [#allocation4], %s15
      %s17 = sshll.u32 [#allocation3], 4
      %s18 = int_to_ptr.vmem [resolvable:$true] %s17
      %23 = dma.hbm_to_vmem [thread:$0]  %s0, 8192, %s18, [#allocation4], 128, 128, 8
    $region5: #{tpu_custom_call.1} parent=1 // pred_fallthru
      _
    // Predicated region
    $region6: #{tpu_custom_call.1} parent=1 // pred_check
      _
    $region7: #{tpu_custom_call.1} parent=1 // pred_check_branch
      %25 = sbr.rel (0) target = $region9
    $region8: #{tpu_custom_call.1} parent=1 // pred_region
      %s27 = ssub.s32 2048, 2048
      %28 = vsyncadd [#allocation7], %s27
      %s29 = sshll.u32 [#allocation6], 4
      %s30 = int_to_ptr.vmem [resolvable:$true] %s29
      %35 = dma.hbm_to_vmem [thread:$0]  %s1, 2048, %s30, [#allocation7], 64, 64, 4
    $region9: #{tpu_custom_call.1} parent=1 // pred_fallthru
      _
    // Predicated region
    $region10: #{tpu_custom_call.1} parent=1 // pred_check
      _
    $region11: #{tpu_custom_call.1} parent=1 // pred_check_branch
      %37 = sbr.rel (0) target = $region13
    $region12: #{tpu_custom_call.1} parent=1 // pred_region
      _
    $region13: #{tpu_custom_call.1} parent=1 // pred_fallthru
      _
    // Predicated region
    $region14: #{tpu_custom_call.1} parent=1 // pred_check
      _
    $region15: #{tpu_custom_call.1} parent=1 // pred_check_branch
      %39 = sbr.rel (0) target = $region17
    $region16: #{tpu_custom_call.1} parent=1 // pred_region
      _
    $region17: #{tpu_custom_call.1} parent=1 // pred_fallthru
      _
    // Predicated region
    $region18: #{tpu_custom_call.1} parent=1 // pred_check
      _
    $region19: #{tpu_custom_call.1} parent=1 // pred_check_branch
      %41 = sbr.rel (0) target = $region21
    $region20: #{tpu_custom_call.1} parent=1 // pred_region
      %42 = dma.done [#allocation4], 8192
    $region21: #{tpu_custom_call.1} parent=1 // pred_fallthru
      _
    // Predicated region
    $region22: #{tpu_custom_call.1} parent=1 // pred_check
      _
    $region23: #{tpu_custom_call.1} parent=1 // pred_check_branch
      %44 = sbr.rel (0) target = $region25
    $region24: #{tpu_custom_call.1} parent=1 // pred_region
      %45 = dma.done [#allocation7], 2048
    $region25: #{tpu_custom_call.1} parent=1 // pred_fallthru
      _
    %p47 = scmp.eq.s32.totalorder 0, 0
    // Predicated region
    $region26: #{tpu_custom_call.1} parent=1 // pred_check
      %p48 = pneg %p47
    $region27: #{tpu_custom_call.1} parent=1 // pred_check_branch
      %50 = sbr.rel (%p48) target = $region29
    $region28: #{tpu_custom_call.1} parent=1 // pred_region
      %51 = vst [vmem:[#allocation2] sm:$0xff] 0.0
      %52 = vst [vmem:[#allocation2 + $0x8] sm:$0xff] 0.0
      %53 = vst [vmem:[#allocation2 + $0x10] sm:$0xff] 0.0
      %54 = vst [vmem:[#allocation2 + $0x18] sm:$0xff] 0.0
      %55 = vst [vmem:[#allocation2 + $0x20] sm:$0xff] 0.0
      %56 = vst [vmem:[#allocation2 + $0x28] sm:$0xff] 0.0
      %57 = vst [vmem:[#allocation2 + $0x30] sm:$0xff] 0.0
      %58 = vst [vmem:[#allocation2 + $0x38] sm:$0xff] 0.0
      %59 = vst [vmem:[#allocation2 + $0x40] sm:$0xff] 0.0
      %60 = vst [vmem:[#allocation2 + $0x48] sm:$0xff] 0.0
      %61 = vst [vmem:[#allocation2 + $0x50] sm:$0xff] 0.0
      %62 = vst [vmem:[#allocation2 + $0x58] sm:$0xff] 0.0
      %63 = vst [vmem:[#allocation2 + $0x60] sm:$0xff] 0.0
      %64 = vst [vmem:[#allocation2 + $0x68] sm:$0xff] 0.0
      %65 = vst [vmem:[#allocation2 + $0x70] sm:$0xff] 0.0
      %66 = vst [vmem:[#allocation2 + $0x78] sm:$0xff] 0.0
      %67 = vst [vmem:[#allocation2 + $0x80] sm:$0xff] 0.0
      %68 = vst [vmem:[#allocation2 + $0x88] sm:$0xff] 0.0
      %69 = vst [vmem:[#allocation2 + $0x90] sm:$0xff] 0.0
      %70 = vst [vmem:[#allocation2 + $0x98] sm:$0xff] 0.0
      %71 = vst [vmem:[#allocation2 + $0xa0] sm:$0xff] 0.0
      %72 = vst [vmem:[#allocation2 + $0xa8] sm:$0xff] 0.0
      %73 = vst [vmem:[#allocation2 + $0xb0] sm:$0xff] 0.0
      %74 = vst [vmem:[#allocation2 + $0xb8] sm:$0xff] 0.0
      %75 = vst [vmem:[#allocation2 + $0xc0] sm:$0xff] 0.0
      %76 = vst [vmem:[#allocation2 + $0xc8] sm:$0xff] 0.0
      %77 = vst [vmem:[#allocation2 + $0xd0] sm:$0xff] 0.0
      %78 = vst [vmem:[#allocation2 + $0xd8] sm:$0xff] 0.0
      %79 = vst [vmem:[#allocation2 + $0xe0] sm:$0xff] 0.0
      %80 = vst [vmem:[#allocation2 + $0xe8] sm:$0xff] 0.0
      %81 = vst [vmem:[#allocation2 + $0xf0] sm:$0xff] 0.0
      %82 = vst [vmem:[#allocation2 + $0xf8] sm:$0xff] 0.0
      %83 = vst [vmem:[#allocation2 + $0x100] sm:$0xff] 0.0
      %84 = vst [vmem:[#allocation2 + $0x108] sm:$0xff] 0.0
      %85 = vst [vmem:[#allocation2 + $0x110] sm:$0xff] 0.0
      %86 = vst [vmem:[#allocation2 + $0x118] sm:$0xff] 0.0
      %87 = vst [vmem:[#allocation2 + $0x120] sm:$0xff] 0.0
      %88 = vst [vmem:[#allocation2 + $0x128] sm:$0xff] 0.0
      %89 = vst [vmem:[#allocation2 + $0x130] sm:$0xff] 0.0
      %90 = vst [vmem:[#allocation2 + $0x138] sm:$0xff] 0.0
      %91 = vst [vmem:[#allocation2 + $0x140] sm:$0xff] 0.0
      %92 = vst [vmem:[#allocation2 + $0x148] sm:$0xff] 0.0
      %93 = vst [vmem:[#allocation2 + $0x150] sm:$0xff] 0.0
      %94 = vst [vmem:[#allocation2 + $0x158] sm:$0xff] 0.0
      %95 = vst [vmem:[#allocation2 + $0x160] sm:$0xff] 0.0
      %96 = vst [vmem:[#allocation2 + $0x168] sm:$0xff] 0.0
      %97 = vst [vmem:[#allocation2 + $0x170] sm:$0xff] 0.0
      %98 = vst [vmem:[#allocation2 + $0x178] sm:$0xff] 0.0
      %99 = vst [vmem:[#allocation2 + $0x180] sm:$0xff] 0.0
      %100 = vst [vmem:[#allocation2 + $0x188] sm:$0xff] 0.0
      %101 = vst [vmem:[#allocation2 + $0x190] sm:$0xff] 0.0
      %102 = vst [vmem:[#allocation2 + $0x198] sm:$0xff] 0.0
      %103 = vst [vmem:[#allocation2 + $0x1a0] sm:$0xff] 0.0
      %104 = vst [vmem:[#allocation2 + $0x1a8] sm:$0xff] 0.0
      %105 = vst [vmem:[#allocation2 + $0x1b0] sm:$0xff] 0.0
      %106 = vst [vmem:[#allocation2 + $0x1b8] sm:$0xff] 0.0
      %107 = vst [vmem:[#allocation2 + $0x1c0] sm:$0xff] 0.0
      %108 = vst [vmem:[#allocation2 + $0x1c8] sm:$0xff] 0.0
      %109 = vst [vmem:[#allocation2 + $0x1d0] sm:$0xff] 0.0
      %110 = vst [vmem:[#allocation2 + $0x1d8] sm:$0xff] 0.0
      %111 = vst [vmem:[#allocation2 + $0x1e0] sm:$0xff] 0.0
      %112 = vst [vmem:[#allocation2 + $0x1e8] sm:$0xff] 0.0
      %113 = vst [vmem:[#allocation2 + $0x1f0] sm:$0xff] 0.0
      %114 = vst [vmem:[#allocation2 + $0x1f8] sm:$0xff] 0.0
    $region29: #{tpu_custom_call.1} parent=1 // pred_fallthru
      _
    %v115 = vld [vmem:[#allocation2] sm:$0xff]
    %v116 = vld [vmem:[#allocation2 + $0x8] sm:$0xff]
    %v117 = vld [vmem:[#allocation2 + $0x10] sm:$0xff]
    %v118 = vld [vmem:[#allocation2 + $0x18] sm:$0xff]
    %v119 = vld [vmem:[#allocation2 + $0x20] sm:$0xff]
    %v120 = vld [vmem:[#allocation2 + $0x28] sm:$0xff]
    %v121 = vld [vmem:[#allocation2 + $0x30] sm:$0xff]
    %v122 = vld [vmem:[#allocation2 + $0x38] sm:$0xff]
    %v123 = vld [vmem:[#allocation2 + $0x40] sm:$0xff]
    %v124 = vld [vmem:[#allocation2 + $0x48] sm:$0xff]
    %v125 = vld [vmem:[#allocation2 + $0x50] sm:$0xff]
    %v126 = vld [vmem:[#allocation2 + $0x58] sm:$0xff]
    %v127 = vld [vmem:[#allocation2 + $0x60] sm:$0xff]
    %v128 = vld [vmem:[#allocation2 + $0x68] sm:$0xff]
    %v129 = vld [vmem:[#allocation2 + $0x70] sm:$0xff]
    %v130 = vld [vmem:[#allocation2 + $0x78] sm:$0xff]
    %v131 = vld [vmem:[#allocation2 + $0x80] sm:$0xff]
    %v132 = vld [vmem:[#allocation2 + $0x88] sm:$0xff]
    %v133 = vld [vmem:[#allocation2 + $0x90] sm:$0xff]
    %v134 = vld [vmem:[#allocation2 + $0x98] sm:$0xff]
    %v135 = vld [vmem:[#allocation2 + $0xa0] sm:$0xff]
    %v136 = vld [vmem:[#allocation2 + $0xa8] sm:$0xff]
    %v137 = vld [vmem:[#allocation2 + $0xb0] sm:$0xff]
    %v138 = vld [vmem:[#allocation2 + $0xb8] sm:$0xff]
    %v139 = vld [vmem:[#allocation2 + $0xc0] sm:$0xff]
    %v140 = vld [vmem:[#allocation2 + $0xc8] sm:$0xff]
    %v141 = vld [vmem:[#allocation2 + $0xd0] sm:$0xff]
    %v142 = vld [vmem:[#allocation2 + $0xd8] sm:$0xff]
    %v143 = vld [vmem:[#allocation2 + $0xe0] sm:$0xff]
    %v144 = vld [vmem:[#allocation2 + $0xe8] sm:$0xff]
    %v145 = vld [vmem:[#allocation2 + $0xf0] sm:$0xff]
    %v146 = vld [vmem:[#allocation2 + $0xf8] sm:$0xff]
    %v147 = vld [vmem:[#allocation2 + $0x100] sm:$0xff]
    %v148 = vld [vmem:[#allocation2 + $0x108] sm:$0xff]
    %v149 = vld [vmem:[#allocation2 + $0x110] sm:$0xff]
    %v150 = vld [vmem:[#allocation2 + $0x118] sm:$0xff]
    %v151 = vld [vmem:[#allocation2 + $0x120] sm:$0xff]
    %v152 = vld [vmem:[#allocation2 + $0x128] sm:$0xff]
    %v153 = vld [vmem:[#allocation2 + $0x130] sm:$0xff]
    %v154 = vld [vmem:[#allocation2 + $0x138] sm:$0xff]
    %v155 = vld [vmem:[#allocation2 + $0x140] sm:$0xff]
    %v156 = vld [vmem:[#allocation2 + $0x148] sm:$0xff]
    %v157 = vld [vmem:[#allocation2 + $0x150] sm:$0xff]
    %v158 = vld [vmem:[#allocation2 + $0x158] sm:$0xff]
    %v159 = vld [vmem:[#allocation2 + $0x160] sm:$0xff]
    %v160 = vld [vmem:[#allocation2 + $0x168] sm:$0xff]
    %v161 = vld [vmem:[#allocation2 + $0x170] sm:$0xff]
    %v162 = vld [vmem:[#allocation2 + $0x178] sm:$0xff]
    %v163 = vld [vmem:[#allocation2 + $0x180] sm:$0xff]
    %v164 = vld [vmem:[#allocation2 + $0x188] sm:$0xff]
    %v165 = vld [vmem:[#allocation2 + $0x190] sm:$0xff]
    %v166 = vld [vmem:[#allocation2 + $0x198] sm:$0xff]
    %v167 = vld [vmem:[#allocation2 + $0x1a0] sm:$0xff]
    %v168 = vld [vmem:[#allocation2 + $0x1a8] sm:$0xff]
    %v169 = vld [vmem:[#allocation2 + $0x1b0] sm:$0xff]
    %v170 = vld [vmem:[#allocation2 + $0x1b8] sm:$0xff]
    %v171 = vld [vmem:[#allocation2 + $0x1c0] sm:$0xff]
    %v172 = vld [vmem:[#allocation2 + $0x1c8] sm:$0xff]
    %v173 = vld [vmem:[#allocation2 + $0x1d0] sm:$0xff]
    %v174 = vld [vmem:[#allocation2 + $0x1d8] sm:$0xff]
    %v175 = vld [vmem:[#allocation2 + $0x1e0] sm:$0xff]
    %v176 = vld [vmem:[#allocation2 + $0x1e8] sm:$0xff]
    %v177 = vld [vmem:[#allocation2 + $0x1f0] sm:$0xff]
    %v178 = vld [vmem:[#allocation2 + $0x1f8] sm:$0xff]
    %v179 = vld [vmem:[#allocation3] sm:$0xff]
    %v180 = vld [vmem:[#allocation3 + $0x8] sm:$0xff]
    %v181 = vld [vmem:[#allocation3 + $0x10] sm:$0xff]
    %v182 = vld [vmem:[#allocation3 + $0x18] sm:$0xff]
    %v183 = vld [vmem:[#allocation3 + $0x20] sm:$0xff]
    %v184 = vld [vmem:[#allocation3 + $0x28] sm:$0xff]
    %v185 = vld [vmem:[#allocation3 + $0x30] sm:$0xff]
    %v186 = vld [vmem:[#allocation3 + $0x38] sm:$0xff]
    %v187 = vld [vmem:[#allocation3 + $0x40] sm:$0xff]
    %v188 = vld [vmem:[#allocation3 + $0x48] sm:$0xff]
    %v189 = vld [vmem:[#allocation3 + $0x50] sm:$0xff]
    %v190 = vld [vmem:[#allocation3 + $0x58] sm:$0xff]
    %v191 = vld [vmem:[#allocation3 + $0x60] sm:$0xff]
    %v192 = vld [vmem:[#allocation3 + $0x68] sm:$0xff]
    %v193 = vld [vmem:[#allocation3 + $0x70] sm:$0xff]
    %v194 = vld [vmem:[#allocation3 + $0x78] sm:$0xff]
    %v195 = vld [vmem:[#allocation3 + $0x80] sm:$0xff]
    %v196 = vld [vmem:[#allocation3 + $0x88] sm:$0xff]
    %v197 = vld [vmem:[#allocation3 + $0x90] sm:$0xff]
    %v198 = vld [vmem:[#allocation3 + $0x98] sm:$0xff]
    %v199 = vld [vmem:[#allocation3 + $0xa0] sm:$0xff]
    %v200 = vld [vmem:[#allocation3 + $0xa8] sm:$0xff]
    %v201 = vld [vmem:[#allocation3 + $0xb0] sm:$0xff]
    %v202 = vld [vmem:[#allocation3 + $0xb8] sm:$0xff]
    %v203 = vld [vmem:[#allocation3 + $0xc0] sm:$0xff]
    %v204 = vld [vmem:[#allocation3 + $0xc8] sm:$0xff]
    %v205 = vld [vmem:[#allocation3 + $0xd0] sm:$0xff]
    %v206 = vld [vmem:[#allocation3 + $0xd8] sm:$0xff]
    %v207 = vld [vmem:[#allocation3 + $0xe0] sm:$0xff]
    %v208 = vld [vmem:[#allocation3 + $0xe8] sm:$0xff]
    %v209 = vld [vmem:[#allocation3 + $0xf0] sm:$0xff]
    %v210 = vld [vmem:[#allocation3 + $0xf8] sm:$0xff]
    %v211 = vld [vmem:[#allocation3 + $0x100] sm:$0xff]
    %v212 = vld [vmem:[#allocation3 + $0x108] sm:$0xff]
    %v213 = vld [vmem:[#allocation3 + $0x110] sm:$0xff]
    %v214 = vld [vmem:[#allocation3 + $0x118] sm:$0xff]
    %v215 = vld [vmem:[#allocation3 + $0x120] sm:$0xff]
    %v216 = vld [vmem:[#allocation3 + $0x128] sm:$0xff]
    %v217 = vld [vmem:[#allocation3 + $0x130] sm:$0xff]
    %v218 = vld [vmem:[#allocation3 + $0x138] sm:$0xff]
    %v219 = vld [vmem:[#allocation3 + $0x140] sm:$0xff]
    %v220 = vld [vmem:[#allocation3 + $0x148] sm:$0xff]
    %v221 = vld [vmem:[#allocation3 + $0x150] sm:$0xff]
    %v222 = vld [vmem:[#allocation3 + $0x158] sm:$0xff]
    %v223 = vld [vmem:[#allocation3 + $0x160] sm:$0xff]
    %v224 = vld [vmem:[#allocation3 + $0x168] sm:$0xff]
    %v225 = vld [vmem:[#allocation3 + $0x170] sm:$0xff]
    %v226 = vld [vmem:[#allocation3 + $0x178] sm:$0xff]
    %v227 = vld [vmem:[#allocation3 + $0x180] sm:$0xff]
    %v228 = vld [vmem:[#allocation3 + $0x188] sm:$0xff]
    %v229 = vld [vmem:[#allocation3 + $0x190] sm:$0xff]
    %v230 = vld [vmem:[#allocation3 + $0x198] sm:$0xff]
    %v231 = vld [vmem:[#allocation3 + $0x1a0] sm:$0xff]
    %v232 = vld [vmem:[#allocation3 + $0x1a8] sm:$0xff]
    %v233 = vld [vmem:[#allocation3 + $0x1b0] sm:$0xff]
    %v234 = vld [vmem:[#allocation3 + $0x1b8] sm:$0xff]
    %v235 = vld [vmem:[#allocation3 + $0x1c0] sm:$0xff]
    %v236 = vld [vmem:[#allocation3 + $0x1c8] sm:$0xff]
    %v237 = vld [vmem:[#allocation3 + $0x1d0] sm:$0xff]
    %v238 = vld [vmem:[#allocation3 + $0x1d8] sm:$0xff]
    %v239 = vld [vmem:[#allocation3 + $0x1e0] sm:$0xff]
    %v240 = vld [vmem:[#allocation3 + $0x1e8] sm:$0xff]
    %v241 = vld [vmem:[#allocation3 + $0x1f0] sm:$0xff]
    %v242 = vld [vmem:[#allocation3 + $0x1f8] sm:$0xff]
    %v243 = vld [vmem:[#allocation6] sm:$0xf]
    %v244 = vld [vmem:[#allocation6 + $0x4] sm:$0xf]
    %v245 = vld [vmem:[#allocation6 + $0x8] sm:$0xf]
    %v246 = vld [vmem:[#allocation6 + $0xc] sm:$0xf]
    %v247 = vld [vmem:[#allocation6 + $0x10] sm:$0xf]
    %v248 = vld [vmem:[#allocation6 + $0x14] sm:$0xf]
    %v249 = vld [vmem:[#allocation6 + $0x18] sm:$0xf]
    %v250 = vld [vmem:[#allocation6 + $0x1c] sm:$0xf]
    %v251 = vld [vmem:[#allocation6 + $0x20] sm:$0xf]
    %v252 = vld [vmem:[#allocation6 + $0x24] sm:$0xf]
    %v253 = vld [vmem:[#allocation6 + $0x28] sm:$0xf]
    %v254 = vld [vmem:[#allocation6 + $0x2c] sm:$0xf]
    %v255 = vld [vmem:[#allocation6 + $0x30] sm:$0xf]
    %v256 = vld [vmem:[#allocation6 + $0x34] sm:$0xf]
    %v257 = vld [vmem:[#allocation6 + $0x38] sm:$0xf]
    %v258 = vld [vmem:[#allocation6 + $0x3c] sm:$0xf]
    %v259 = vld [vmem:[#allocation6 + $0x40] sm:$0xf]
    %v260 = vld [vmem:[#allocation6 + $0x44] sm:$0xf]
    %v261 = vld [vmem:[#allocation6 + $0x48] sm:$0xf]
    %v262 = vld [vmem:[#allocation6 + $0x4c] sm:$0xf]
    %v263 = vld [vmem:[#allocation6 + $0x50] sm:$0xf]
    %v264 = vld [vmem:[#allocation6 + $0x54] sm:$0xf]
    %v265 = vld [vmem:[#allocation6 + $0x58] sm:$0xf]
    %v266 = vld [vmem:[#allocation6 + $0x5c] sm:$0xf]
    %v267 = vld [vmem:[#allocation6 + $0x60] sm:$0xf]
    %v268 = vld [vmem:[#allocation6 + $0x64] sm:$0xf]
    %v269 = vld [vmem:[#allocation6 + $0x68] sm:$0xf]
    %v270 = vld [vmem:[#allocation6 + $0x6c] sm:$0xf]
    %v271 = vld [vmem:[#allocation6 + $0x70] sm:$0xf]
    %v272 = vld [vmem:[#allocation6 + $0x74] sm:$0xf]
    %v273 = vld [vmem:[#allocation6 + $0x78] sm:$0xf]
    %v274 = vld [vmem:[#allocation6 + $0x7c] sm:$0xf]
    %v339 = vunpack.c.l.b16 %v179
    %v340 = vunpack.c.h.b16 %v179
    %v341 = vunpack.c.l.b16 %v180
    %v342 = vunpack.c.h.b16 %v180
    %v343 = vunpack.c.l.b16 %v181
    %v344 = vunpack.c.h.b16 %v181
    %v345 = vunpack.c.l.b16 %v182
    %v346 = vunpack.c.h.b16 %v182
    %v347 = vunpack.c.l.b16 %v183
    %v348 = vunpack.c.h.b16 %v183
    %v349 = vunpack.c.l.b16 %v184
    %v350 = vunpack.c.h.b16 %v184
    %v351 = vunpack.c.l.b16 %v185
    %v352 = vunpack.c.h.b16 %v185
    %v353 = vunpack.c.l.b16 %v186
    %v354 = vunpack.c.h.b16 %v186
    %v355 = vunpack.c.l.b16 %v187
    %v356 = vunpack.c.h.b16 %v187
    %v357 = vunpack.c.l.b16 %v188
    %v358 = vunpack.c.h.b16 %v188
    %v359 = vunpack.c.l.b16 %v189
    %v360 = vunpack.c.h.b16 %v189
    %v361 = vunpack.c.l.b16 %v190
    %v362 = vunpack.c.h.b16 %v190
    %v363 = vunpack.c.l.b16 %v191
    %v364 = vunpack.c.h.b16 %v191
    %v365 = vunpack.c.l.b16 %v192
    %v366 = vunpack.c.h.b16 %v192
    %v367 = vunpack.c.l.b16 %v193
    %v368 = vunpack.c.h.b16 %v193
    %v369 = vunpack.c.l.b16 %v194
    %v370 = vunpack.c.h.b16 %v194
    %v371 = vunpack.c.l.b16 %v195
    %v372 = vunpack.c.h.b16 %v195
    %v373 = vunpack.c.l.b16 %v196
    %v374 = vunpack.c.h.b16 %v196
    %v375 = vunpack.c.l.b16 %v197
    %v376 = vunpack.c.h.b16 %v197
    %v377 = vunpack.c.l.b16 %v198
    %v378 = vunpack.c.h.b16 %v198
    %v379 = vunpack.c.l.b16 %v199
    %v380 = vunpack.c.h.b16 %v199
    %v381 = vunpack.c.l.b16 %v200
    %v382 = vunpack.c.h.b16 %v200
    %v383 = vunpack.c.l.b16 %v201
    %v384 = vunpack.c.h.b16 %v201
    %v385 = vunpack.c.l.b16 %v202
    %v386 = vunpack.c.h.b16 %v202
    %v387 = vunpack.c.l.b16 %v203
    %v388 = vunpack.c.h.b16 %v203
    %v389 = vunpack.c.l.b16 %v204
    %v390 = vunpack.c.h.b16 %v204
    %v391 = vunpack.c.l.b16 %v205
    %v392 = vunpack.c.h.b16 %v205
    %v393 = vunpack.c.l.b16 %v206
    %v394 = vunpack.c.h.b16 %v206
    %v395 = vunpack.c.l.b16 %v207
    %v396 = vunpack.c.h.b16 %v207
    %v397 = vunpack.c.l.b16 %v208
    %v398 = vunpack.c.h.b16 %v208
    %v399 = vunpack.c.l.b16 %v209
    %v400 = vunpack.c.h.b16 %v209
    %v401 = vunpack.c.l.b16 %v210
    %v402 = vunpack.c.h.b16 %v210
    %v403 = vunpack.c.l.b16 %v211
    %v404 = vunpack.c.h.b16 %v211
    %v405 = vunpack.c.l.b16 %v212
    %v406 = vunpack.c.h.b16 %v212
    %v407 = vunpack.c.l.b16 %v213
    %v408 = vunpack.c.h.b16 %v213
    %v409 = vunpack.c.l.b16 %v214
    %v410 = vunpack.c.h.b16 %v214
    %v411 = vunpack.c.l.b16 %v215
    %v412 = vunpack.c.h.b16 %v215
    %v413 = vunpack.c.l.b16 %v216
    %v414 = vunpack.c.h.b16 %v216
    %v415 = vunpack.c.l.b16 %v217
    %v416 = vunpack.c.h.b16 %v217
    %v417 = vunpack.c.l.b16 %v218
    %v418 = vunpack.c.h.b16 %v218
    %v419 = vunpack.c.l.b16 %v219
    %v420 = vunpack.c.h.b16 %v219
    %v421 = vunpack.c.l.b16 %v220
    %v422 = vunpack.c.h.b16 %v220
    %v423 = vunpack.c.l.b16 %v221
    %v424 = vunpack.c.h.b16 %v221
    %v425 = vunpack.c.l.b16 %v222
    %v426 = vunpack.c.h.b16 %v222
    %v427 = vunpack.c.l.b16 %v223
    %v428 = vunpack.c.h.b16 %v223
    %v429 = vunpack.c.l.b16 %v224
    %v430 = vunpack.c.h.b16 %v224
    %v431 = vunpack.c.l.b16 %v225
    %v432 = vunpack.c.h.b16 %v225
    %v433 = vunpack.c.l.b16 %v226
    %v434 = vunpack.c.h.b16 %v226
    %v435 = vunpack.c.l.b16 %v227
    %v436 = vunpack.c.h.b16 %v227
    %v437 = vunpack.c.l.b16 %v228
    %v438 = vunpack.c.h.b16 %v228
    %v439 = vunpack.c.l.b16 %v229
    %v440 = vunpack.c.h.b16 %v229
    %v441 = vunpack.c.l.b16 %v230
    %v442 = vunpack.c.h.b16 %v230
    %v443 = vunpack.c.l.b16 %v231
    %v444 = vunpack.c.h.b16 %v231
    %v445 = vunpack.c.l.b16 %v232
    %v446 = vunpack.c.h.b16 %v232
    %v447 = vunpack.c.l.b16 %v233
    %v448 = vunpack.c.h.b16 %v233
    %v449 = vunpack.c.l.b16 %v234
    %v450 = vunpack.c.h.b16 %v234
    %v451 = vunpack.c.l.b16 %v235
    %v452 = vunpack.c.h.b16 %v235
    %v453 = vunpack.c.l.b16 %v236
    %v454 = vunpack.c.h.b16 %v236
    %v455 = vunpack.c.l.b16 %v237
    %v456 = vunpack.c.h.b16 %v237
    %v457 = vunpack.c.l.b16 %v238
    %v458 = vunpack.c.h.b16 %v238
    %v459 = vunpack.c.l.b16 %v239
    %v460 = vunpack.c.h.b16 %v239
    %v461 = vunpack.c.l.b16 %v240
    %v462 = vunpack.c.h.b16 %v240
    %v463 = vunpack.c.l.b16 %v241
    %v464 = vunpack.c.h.b16 %v241
    %v465 = vunpack.c.l.b16 %v242
    %v466 = vunpack.c.h.b16 %v242
    %v467 = vpack.c.b16 %v341, %v339
    %v468 = vpack.c.b16 %v342, %v340
    %v469 = vpack.c.b16 %v345, %v343
    %v470 = vpack.c.b16 %v346, %v344
    %v471 = vpack.c.b16 %v349, %v347
    %v472 = vpack.c.b16 %v350, %v348
    %v473 = vpack.c.b16 %v353, %v351
    %v474 = vpack.c.b16 %v354, %v352
    %v475 = vpack.c.b16 %v357, %v355
    %v476 = vpack.c.b16 %v358, %v356
    %v477 = vpack.c.b16 %v361, %v359
    %v478 = vpack.c.b16 %v362, %v360
    %v479 = vpack.c.b16 %v365, %v363
    %v480 = vpack.c.b16 %v366, %v364
    %v481 = vpack.c.b16 %v369, %v367
    %v482 = vpack.c.b16 %v370, %v368
    %v483 = vpack.c.b16 %v373, %v371
    %v484 = vpack.c.b16 %v374, %v372
    %v485 = vpack.c.b16 %v377, %v375
    %v486 = vpack.c.b16 %v378, %v376
    %v487 = vpack.c.b16 %v381, %v379
    %v488 = vpack.c.b16 %v382, %v380
    %v489 = vpack.c.b16 %v385, %v383
    %v490 = vpack.c.b16 %v386, %v384
    %v491 = vpack.c.b16 %v389, %v387
    %v492 = vpack.c.b16 %v390, %v388
    %v493 = vpack.c.b16 %v393, %v391
    %v494 = vpack.c.b16 %v394, %v392
    %v495 = vpack.c.b16 %v397, %v395
    %v496 = vpack.c.b16 %v398, %v396
    %v497 = vpack.c.b16 %v401, %v399
    %v498 = vpack.c.b16 %v402, %v400
    %v499 = vpack.c.b16 %v405, %v403
    %v500 = vpack.c.b16 %v406, %v404
    %v501 = vpack.c.b16 %v409, %v407
    %v502 = vpack.c.b16 %v410, %v408
    %v503 = vpack.c.b16 %v413, %v411
    %v504 = vpack.c.b16 %v414, %v412
    %v505 = vpack.c.b16 %v417, %v415
    %v506 = vpack.c.b16 %v418, %v416
    %v507 = vpack.c.b16 %v421, %v419
    %v508 = vpack.c.b16 %v422, %v420
    %v509 = vpack.c.b16 %v425, %v423
    %v510 = vpack.c.b16 %v426, %v424
    %v511 = vpack.c.b16 %v429, %v427
    %v512 = vpack.c.b16 %v430, %v428
    %v513 = vpack.c.b16 %v433, %v431
    %v514 = vpack.c.b16 %v434, %v432
    %v515 = vpack.c.b16 %v437, %v435
    %v516 = vpack.c.b16 %v438, %v436
    %v517 = vpack.c.b16 %v441, %v439
    %v518 = vpack.c.b16 %v442, %v440
    %v519 = vpack.c.b16 %v445, %v443
    %v520 = vpack.c.b16 %v446, %v444
    %v521 = vpack.c.b16 %v449, %v447
    %v522 = vpack.c.b16 %v450, %v448
    %v523 = vpack.c.b16 %v453, %v451
    %v524 = vpack.c.b16 %v454, %v452
    %v525 = vpack.c.b16 %v457, %v455
    %v526 = vpack.c.b16 %v458, %v456
    %v527 = vpack.c.b16 %v461, %v459
    %v528 = vpack.c.b16 %v462, %v460
    %v529 = vpack.c.b16 %v465, %v463
    %v530 = vpack.c.b16 %v466, %v464
    %v627 = vunpack.c.l.b16 %v243
    %v628 = vunpack.c.l.b16 %v244
    %v629 = vunpack.c.l.b16 %v245
    %v630 = vunpack.c.l.b16 %v246
    %v631 = vunpack.c.l.b16 %v247
    %v632 = vunpack.c.l.b16 %v248
    %v633 = vunpack.c.l.b16 %v249
    %v634 = vunpack.c.l.b16 %v250
    %v635 = vunpack.c.l.b16 %v251
    %v636 = vunpack.c.l.b16 %v252
    %v637 = vunpack.c.l.b16 %v253
    %v638 = vunpack.c.l.b16 %v254
    %v639 = vunpack.c.l.b16 %v255
    %v640 = vunpack.c.l.b16 %v256
    %v641 = vunpack.c.l.b16 %v257
    %v642 = vunpack.c.l.b16 %v258
    %v643 = vunpack.c.l.b16 %v259
    %v644 = vunpack.c.l.b16 %v260
    %v645 = vunpack.c.l.b16 %v261
    %v646 = vunpack.c.l.b16 %v262
    %v647 = vunpack.c.l.b16 %v263
    %v648 = vunpack.c.l.b16 %v264
    %v649 = vunpack.c.l.b16 %v265
    %v650 = vunpack.c.l.b16 %v266
    %v651 = vunpack.c.l.b16 %v267
    %v652 = vunpack.c.l.b16 %v268
    %v653 = vunpack.c.l.b16 %v269
    %v654 = vunpack.c.l.b16 %v270
    %v655 = vunpack.c.l.b16 %v271
    %v656 = vunpack.c.l.b16 %v272
    %v657 = vunpack.c.l.b16 %v273
    %v658 = vunpack.c.l.b16 %v274
    %v659 = vpack.c.b16 %v628, %v627
    %v660 = vpack.c.b16 %v630, %v629
    %v661 = vpack.c.b16 %v632, %v631
    %v662 = vpack.c.b16 %v634, %v633
    %v663 = vpack.c.b16 %v636, %v635
    %v664 = vpack.c.b16 %v638, %v637
    %v665 = vpack.c.b16 %v640, %v639
    %v666 = vpack.c.b16 %v642, %v641
    %v667 = vpack.c.b16 %v644, %v643
    %v668 = vpack.c.b16 %v646, %v645
    %v669 = vpack.c.b16 %v648, %v647
    %v670 = vpack.c.b16 %v650, %v649
    %v671 = vpack.c.b16 %v652, %v651
    %v672 = vpack.c.b16 %v654, %v653
    %v673 = vpack.c.b16 %v656, %v655
    %v674 = vpack.c.b16 %v658, %v657
    %691 = vmatprep.subr.bf16.mxu0 0
    %692 = vmatpush1.bf16.msra.mxu0 %v666
    %693 = vmatprep.subr.bf16.mxu0 0
    %694 = vmatpush1.bf16.msra.mxu0 %v665
    %695 = vmatprep.subr.bf16.mxu0 0
    %696 = vmatpush1.bf16.msra.mxu0 %v664
    %697 = vmatprep.subr.bf16.mxu0 0
    %698 = vmatpush1.bf16.msra.mxu0 %v663
    %699 = vmatprep.subr.bf16.mxu0 0
    %700 = vmatpush1.bf16.msra.mxu0 %v662
    %701 = vmatprep.subr.bf16.mxu0 0
    %702 = vmatpush1.bf16.msra.mxu0 %v661
    %703 = vmatprep.subr.bf16.mxu0 0
    %704 = vmatpush1.bf16.msra.mxu0 %v660
    %705 = vmatprep.subr.bf16.mxu0 0
    %706 = vmatpush1.bf16.msra.mxu0 %v659
    %707 = vmatprep.subr.bf16.mxu0 0
    %708 = vmatpush2.bf16.msra.mxu0 %v674
    %709 = vmatprep.subr.bf16.mxu0 0
    %710 = vmatpush2.bf16.msra.mxu0 %v673
    %711 = vmatprep.subr.bf16.mxu0 0
    %712 = vmatpush2.bf16.msra.mxu0 %v672
    %713 = vmatprep.subr.bf16.mxu0 0
    %714 = vmatpush2.bf16.msra.mxu0 %v671
    %715 = vmatprep.subr.bf16.mxu0 0
    %716 = vmatpush2.bf16.msra.mxu0 %v670
    %717 = vmatprep.subr.bf16.mxu0 0
    %718 = vmatpush2.bf16.msra.mxu0 %v669
    %719 = vmatprep.subr.bf16.mxu0 0
    %720 = vmatpush2.bf16.msra.mxu0 %v668
    %721 = vmatprep.subr.bf16.mxu0 0
    %722 = vmatpush2.bf16.msra.mxu0 %v667
    %723 = vmatprep.mubr.bf16.mxu0 %v468
    %724 = vmatmul.mubr.bf16.gmra.mxu0 %v467
    %v725 = vpop.f32.mrf.mxu0
    %v726 = vadd.f32 0.0, %v725
    %v727 = vpop.f32.mrf.mxu0
    %v728 = vpop.f32.mrf.mxu0
    %v729 = vadd.f32 0.0, %v728
    %v730 = vpop.f32.mrf.mxu0
    %731 = vmatprep.mubr.bf16.mxu0 %v470
    %732 = vmatmul.mubr.bf16.gmra.mxu0 %v469
    %v733 = vpop.f32.mrf.mxu0
    %v734 = vadd.f32 0.0, %v733
    %v735 = vpop.f32.mrf.mxu0
    %v736 = vpop.f32.mrf.mxu0
    %v737 = vadd.f32 0.0, %v736
    %v738 = vpop.f32.mrf.mxu0
    %739 = vmatprep.mubr.bf16.mxu0 %v472
    %740 = vmatmul.mubr.bf16.gmra.mxu0 %v471
    %v741 = vpop.f32.mrf.mxu0
    %v742 = vadd.f32 0.0, %v741
    %v743 = vpop.f32.mrf.mxu0
    %v744 = vpop.f32.mrf.mxu0
    %v745 = vadd.f32 0.0, %v744
    %v746 = vpop.f32.mrf.mxu0
    %747 = vmatprep.mubr.bf16.mxu0 %v474
    %748 = vmatmul.mubr.bf16.gmra.mxu0 %v473
    %v749 = vpop.f32.mrf.mxu0
    %v750 = vadd.f32 0.0, %v749
    %v751 = vpop.f32.mrf.mxu0
    %v752 = vpop.f32.mrf.mxu0
    %v753 = vadd.f32 0.0, %v752
    %v754 = vpop.f32.mrf.mxu0
    %755 = vmatprep.mubr.bf16.mxu0 %v476
    %756 = vmatmul.mubr.bf16.gmra.mxu0 %v475
    %v757 = vpop.f32.mrf.mxu0
    %v758 = vadd.f32 0.0, %v757
    %v759 = vpop.f32.mrf.mxu0
    %v760 = vpop.f32.mrf.mxu0
    %v761 = vadd.f32 0.0, %v760
    %v762 = vpop.f32.mrf.mxu0
    %763 = vmatprep.mubr.bf16.mxu0 %v478
    %764 = vmatmul.mubr.bf16.gmra.mxu0 %v477
    %v765 = vpop.f32.mrf.mxu0
    %v766 = vadd.f32 0.0, %v765
    %v767 = vpop.f32.mrf.mxu0
    %v768 = vpop.f32.mrf.mxu0
    %v769 = vadd.f32 0.0, %v768
    %v770 = vpop.f32.mrf.mxu0
    %771 = vmatprep.mubr.bf16.mxu0 %v480
    %772 = vmatmul.mubr.bf16.gmra.mxu0 %v479
    %v773 = vpop.f32.mrf.mxu0
    %v774 = vadd.f32 0.0, %v773
    %v775 = vpop.f32.mrf.mxu0
    %v776 = vpop.f32.mrf.mxu0
    %v777 = vadd.f32 0.0, %v776
    %v778 = vpop.f32.mrf.mxu0
    %779 = vmatprep.mubr.bf16.mxu0 %v482
    %780 = vmatmul.mubr.bf16.gmra.mxu0 %v481
    %v781 = vpop.f32.mrf.mxu0
    %v782 = vadd.f32 0.0, %v781
    %v783 = vpop.f32.mrf.mxu0
    %v784 = vpop.f32.mrf.mxu0
    %v785 = vadd.f32 0.0, %v784
    %v786 = vpop.f32.mrf.mxu0
    %787 = vmatprep.mubr.bf16.mxu0 %v484
    %788 = vmatmul.mubr.bf16.gmra.mxu0 %v483
    %v789 = vpop.f32.mrf.mxu0
    %v790 = vadd.f32 0.0, %v789
    %v791 = vpop.f32.mrf.mxu0
    %v792 = vpop.f32.mrf.mxu0
    %v793 = vadd.f32 0.0, %v792
    %v794 = vpop.f32.mrf.mxu0
    %795 = vmatprep.mubr.bf16.mxu0 %v486
    %796 = vmatmul.mubr.bf16.gmra.mxu0 %v485
    %v797 = vpop.f32.mrf.mxu0
    %v798 = vadd.f32 0.0, %v797
    %v799 = vpop.f32.mrf.mxu0
    %v800 = vpop.f32.mrf.mxu0
    %v801 = vadd.f32 0.0, %v800
    %v802 = vpop.f32.mrf.mxu0
    %803 = vmatprep.mubr.bf16.mxu0 %v488
    %804 = vmatmul.mubr.bf16.gmra.mxu0 %v487
    %v805 = vpop.f32.mrf.mxu0
    %v806 = vadd.f32 0.0, %v805
    %v807 = vpop.f32.mrf.mxu0
    %v808 = vpop.f32.mrf.mxu0
    %v809 = vadd.f32 0.0, %v808
    %v810 = vpop.f32.mrf.mxu0
    %811 = vmatprep.mubr.bf16.mxu0 %v490
    %812 = vmatmul.mubr.bf16.gmra.mxu0 %v489
    %v813 = vpop.f32.mrf.mxu0
    %v814 = vadd.f32 0.0, %v813
    %v815 = vpop.f32.mrf.mxu0
    %v816 = vpop.f32.mrf.mxu0
    %v817 = vadd.f32 0.0, %v816
    %v818 = vpop.f32.mrf.mxu0
    %819 = vmatprep.mubr.bf16.mxu0 %v492
    %820 = vmatmul.mubr.bf16.gmra.mxu0 %v491
    %v821 = vpop.f32.mrf.mxu0
    %v822 = vadd.f32 0.0, %v821
    %v823 = vpop.f32.mrf.mxu0
    %v824 = vpop.f32.mrf.mxu0
    %v825 = vadd.f32 0.0, %v824
    %v826 = vpop.f32.mrf.mxu0
    %827 = vmatprep.mubr.bf16.mxu0 %v494
    %828 = vmatmul.mubr.bf16.gmra.mxu0 %v493
    %v829 = vpop.f32.mrf.mxu0
    %v830 = vadd.f32 0.0, %v829
    %v831 = vpop.f32.mrf.mxu0
    %v832 = vpop.f32.mrf.mxu0
    %v833 = vadd.f32 0.0, %v832
    %v834 = vpop.f32.mrf.mxu0
    %835 = vmatprep.mubr.bf16.mxu0 %v496
    %836 = vmatmul.mubr.bf16.gmra.mxu0 %v495
    %v837 = vpop.f32.mrf.mxu0
    %v838 = vadd.f32 0.0, %v837
    %v839 = vpop.f32.mrf.mxu0
    %v840 = vpop.f32.mrf.mxu0
    %v841 = vadd.f32 0.0, %v840
    %v842 = vpop.f32.mrf.mxu0
    %843 = vmatprep.mubr.bf16.mxu0 %v498
    %844 = vmatmul.mubr.bf16.gmra.mxu0 %v497
    %v845 = vpop.f32.mrf.mxu0
    %v846 = vadd.f32 0.0, %v845
    %v847 = vpop.f32.mrf.mxu0
    %v848 = vpop.f32.mrf.mxu0
    %v849 = vadd.f32 0.0, %v848
    %v850 = vpop.f32.mrf.mxu0
    %851 = vmatprep.mubr.bf16.mxu0 %v500
    %852 = vmatmul.mubr.bf16.gmra.mxu0 %v499
    %v853 = vpop.f32.mrf.mxu0
    %v854 = vadd.f32 0.0, %v853
    %v855 = vpop.f32.mrf.mxu0
    %v856 = vpop.f32.mrf.mxu0
    %v857 = vadd.f32 0.0, %v856
    %v858 = vpop.f32.mrf.mxu0
    %859 = vmatprep.mubr.bf16.mxu0 %v502
    %860 = vmatmul.mubr.bf16.gmra.mxu0 %v501
    %v861 = vpop.f32.mrf.mxu0
    %v862 = vadd.f32 0.0, %v861
    %v863 = vpop.f32.mrf.mxu0
    %v864 = vpop.f32.mrf.mxu0
    %v865 = vadd.f32 0.0, %v864
    %v866 = vpop.f32.mrf.mxu0
    %867 = vmatprep.mubr.bf16.mxu0 %v504
    %868 = vmatmul.mubr.bf16.gmra.mxu0 %v503
    %v869 = vpop.f32.mrf.mxu0
    %v870 = vadd.f32 0.0, %v869
    %v871 = vpop.f32.mrf.mxu0
    %v872 = vpop.f32.mrf.mxu0
    %v873 = vadd.f32 0.0, %v872
    %v874 = vpop.f32.mrf.mxu0
    %875 = vmatprep.mubr.bf16.mxu0 %v506
    %876 = vmatmul.mubr.bf16.gmra.mxu0 %v505
    %v877 = vpop.f32.mrf.mxu0
    %v878 = vadd.f32 0.0, %v877
    %v879 = vpop.f32.mrf.mxu0
    %v880 = vpop.f32.mrf.mxu0
    %v881 = vadd.f32 0.0, %v880
    %v882 = vpop.f32.mrf.mxu0
    %883 = vmatprep.mubr.bf16.mxu0 %v508
    %884 = vmatmul.mubr.bf16.gmra.mxu0 %v507
    %v885 = vpop.f32.mrf.mxu0
    %v886 = vadd.f32 0.0, %v885
    %v887 = vpop.f32.mrf.mxu0
    %v888 = vpop.f32.mrf.mxu0
    %v889 = vadd.f32 0.0, %v888
    %v890 = vpop.f32.mrf.mxu0
    %891 = vmatprep.mubr.bf16.mxu0 %v510
    %892 = vmatmul.mubr.bf16.gmra.mxu0 %v509
    %v893 = vpop.f32.mrf.mxu0
    %v894 = vadd.f32 0.0, %v893
    %v895 = vpop.f32.mrf.mxu0
    %v896 = vpop.f32.mrf.mxu0
    %v897 = vadd.f32 0.0, %v896
    %v898 = vpop.f32.mrf.mxu0
    %899 = vmatprep.mubr.bf16.mxu0 %v512
    %900 = vmatmul.mubr.bf16.gmra.mxu0 %v511
    %v901 = vpop.f32.mrf.mxu0
    %v902 = vadd.f32 0.0, %v901
    %v903 = vpop.f32.mrf.mxu0
    %v904 = vpop.f32.mrf.mxu0
    %v905 = vadd.f32 0.0, %v904
    %v906 = vpop.f32.mrf.mxu0
    %907 = vmatprep.mubr.bf16.mxu0 %v514
    %908 = vmatmul.mubr.bf16.gmra.mxu0 %v513
    %v909 = vpop.f32.mrf.mxu0
    %v910 = vadd.f32 0.0, %v909
    %v911 = vpop.f32.mrf.mxu0
    %v912 = vpop.f32.mrf.mxu0
    %v913 = vadd.f32 0.0, %v912
    %v914 = vpop.f32.mrf.mxu0
    %915 = vmatprep.mubr.bf16.mxu0 %v516
    %916 = vmatmul.mubr.bf16.gmra.mxu0 %v515
    %v917 = vpop.f32.mrf.mxu0
    %v918 = vadd.f32 0.0, %v917
    %v919 = vpop.f32.mrf.mxu0
    %v920 = vpop.f32.mrf.mxu0
    %v921 = vadd.f32 0.0, %v920
    %v922 = vpop.f32.mrf.mxu0
    %923 = vmatprep.mubr.bf16.mxu0 %v518
    %924 = vmatmul.mubr.bf16.gmra.mxu0 %v517
    %v925 = vpop.f32.mrf.mxu0
    %v926 = vadd.f32 0.0, %v925
    %v927 = vpop.f32.mrf.mxu0
    %v928 = vpop.f32.mrf.mxu0
    %v929 = vadd.f32 0.0, %v928
    %v930 = vpop.f32.mrf.mxu0
    %931 = vmatprep.mubr.bf16.mxu0 %v520
    %932 = vmatmul.mubr.bf16.gmra.mxu0 %v519
    %v933 = vpop.f32.mrf.mxu0
    %v934 = vadd.f32 0.0, %v933
    %v935 = vpop.f32.mrf.mxu0
    %v936 = vpop.f32.mrf.mxu0
    %v937 = vadd.f32 0.0, %v936
    %v938 = vpop.f32.mrf.mxu0
    %939 = vmatprep.mubr.bf16.mxu0 %v522
    %940 = vmatmul.mubr.bf16.gmra.mxu0 %v521
    %v941 = vpop.f32.mrf.mxu0
    %v942 = vadd.f32 0.0, %v941
    %v943 = vpop.f32.mrf.mxu0
    %v944 = vpop.f32.mrf.mxu0
    %v945 = vadd.f32 0.0, %v944
    %v946 = vpop.f32.mrf.mxu0
    %947 = vmatprep.mubr.bf16.mxu0 %v524
    %948 = vmatmul.mubr.bf16.gmra.mxu0 %v523
    %v949 = vpop.f32.mrf.mxu0
    %v950 = vadd.f32 0.0, %v949
    %v951 = vpop.f32.mrf.mxu0
    %v952 = vpop.f32.mrf.mxu0
    %v953 = vadd.f32 0.0, %v952
    %v954 = vpop.f32.mrf.mxu0
    %955 = vmatprep.mubr.bf16.mxu0 %v526
    %956 = vmatmul.mubr.bf16.gmra.mxu0 %v525
    %v957 = vpop.f32.mrf.mxu0
    %v958 = vadd.f32 0.0, %v957
    %v959 = vpop.f32.mrf.mxu0
    %v960 = vpop.f32.mrf.mxu0
    %v961 = vadd.f32 0.0, %v960
    %v962 = vpop.f32.mrf.mxu0
    %963 = vmatprep.mubr.bf16.mxu0 %v528
    %964 = vmatmul.mubr.bf16.gmra.mxu0 %v527
    %v965 = vpop.f32.mrf.mxu0
    %v966 = vadd.f32 0.0, %v965
    %v967 = vpop.f32.mrf.mxu0
    %v968 = vpop.f32.mrf.mxu0
    %v969 = vadd.f32 0.0, %v968
    %v970 = vpop.f32.mrf.mxu0
    %971 = vmatprep.mubr.bf16.mxu0 %v530
    %972 = vmatmul.mubr.bf16.gmra.mxu0 %v529
    %v973 = vpop.f32.mrf.mxu0
    %v974 = vadd.f32 0.0, %v973
    %v975 = vpop.f32.mrf.mxu0
    %v976 = vpop.f32.mrf.mxu0
    %v977 = vadd.f32 0.0, %v976
    %v978 = vpop.f32.mrf.mxu0
    %979 = vdwg.mxu0
    %v980 = vadd.f32 %v115, %v726
    %v981 = vadd.f32 %v116, %v729
    %v982 = vadd.f32 %v117, %v734
    %v983 = vadd.f32 %v118, %v737
    %v984 = vadd.f32 %v119, %v742
    %v985 = vadd.f32 %v120, %v745
    %v986 = vadd.f32 %v121, %v750
    %v987 = vadd.f32 %v122, %v753
    %v988 = vadd.f32 %v123, %v758
    %v989 = vadd.f32 %v124, %v761
    %v990 = vadd.f32 %v125, %v766
    %v991 = vadd.f32 %v126, %v769
    %v992 = vadd.f32 %v127, %v774
    %v993 = vadd.f32 %v128, %v777
    %v994 = vadd.f32 %v129, %v782
    %v995 = vadd.f32 %v130, %v785
    %v996 = vadd.f32 %v131, %v790
    %v997 = vadd.f32 %v132, %v793
    %v998 = vadd.f32 %v133, %v798
    %v999 = vadd.f32 %v134, %v801
    %v1000 = vadd.f32 %v135, %v806
    %v1001 = vadd.f32 %v136, %v809
    %v1002 = vadd.f32 %v137, %v814
    %v1003 = vadd.f32 %v138, %v817
    %v1004 = vadd.f32 %v139, %v822
    %v1005 = vadd.f32 %v140, %v825
    %v1006 = vadd.f32 %v141, %v830
    %v1007 = vadd.f32 %v142, %v833
    %v1008 = vadd.f32 %v143, %v838
    %v1009 = vadd.f32 %v144, %v841
    %v1010 = vadd.f32 %v145, %v846
    %v1011 = vadd.f32 %v146, %v849
    %v1012 = vadd.f32 %v147, %v854
    %v1013 = vadd.f32 %v148, %v857
    %v1014 = vadd.f32 %v149, %v862
    %v1015 = vadd.f32 %v150, %v865
    %v1016 = vadd.f32 %v151, %v870
    %v1017 = vadd.f32 %v152, %v873
    %v1018 = vadd.f32 %v153, %v878
    %v1019 = vadd.f32 %v154, %v881
    %v1020 = vadd.f32 %v155, %v886
    %v1021 = vadd.f32 %v156, %v889
    %v1022 = vadd.f32 %v157, %v894
    %v1023 = vadd.f32 %v158, %v897
    %v1024 = vadd.f32 %v159, %v902
    %v1025 = vadd.f32 %v160, %v905
    %v1026 = vadd.f32 %v161, %v910
    %v1027 = vadd.f32 %v162, %v913
    %v1028 = vadd.f32 %v163, %v918
    %v1029 = vadd.f32 %v164, %v921
    %v1030 = vadd.f32 %v165, %v926
    %v1031 = vadd.f32 %v166, %v929
    %v1032 = vadd.f32 %v167, %v934
    %v1033 = vadd.f32 %v168, %v937
    %v1034 = vadd.f32 %v169, %v942
    %v1035 = vadd.f32 %v170, %v945
    %v1036 = vadd.f32 %v171, %v950
    %v1037 = vadd.f32 %v172, %v953
    %v1038 = vadd.f32 %v173, %v958
    %v1039 = vadd.f32 %v174, %v961
    %v1040 = vadd.f32 %v175, %v966
    %v1041 = vadd.f32 %v176, %v969
    %v1042 = vadd.f32 %v177, %v974
    %v1043 = vadd.f32 %v178, %v977
    %1044 = vst [vmem:[#allocation2] sm:$0xff] %v980
    %1045 = vst [vmem:[#allocation2 + $0x8] sm:$0xff] %v981
    %1046 = vst [vmem:[#allocation2 + $0x10] sm:$0xff] %v982
    %1047 = vst [vmem:[#allocation2 + $0x18] sm:$0xff] %v983
    %1048 = vst [vmem:[#allocation2 + $0x20] sm:$0xff] %v984
    %1049 = vst [vmem:[#allocation2 + $0x28] sm:$0xff] %v985
    %1050 = vst [vmem:[#allocation2 + $0x30] sm:$0xff] %v986
    %1051 = vst [vmem:[#allocation2 + $0x38] sm:$0xff] %v987
    %1052 = vst [vmem:[#allocation2 + $0x40] sm:$0xff] %v988
    %1053 = vst [vmem:[#allocation2 + $0x48] sm:$0xff] %v989
    %1054 = vst [vmem:[#allocation2 + $0x50] sm:$0xff] %v990
    %1055 = vst [vmem:[#allocation2 + $0x58] sm:$0xff] %v991
    %1056 = vst [vmem:[#allocation2 + $0x60] sm:$0xff] %v992
    %1057 = vst [vmem:[#allocation2 + $0x68] sm:$0xff] %v993
    %1058 = vst [vmem:[#allocation2 + $0x70] sm:$0xff] %v994
    %1059 = vst [vmem:[#allocation2 + $0x78] sm:$0xff] %v995
    %1060 = vst [vmem:[#allocation2 + $0x80] sm:$0xff] %v996
    %1061 = vst [vmem:[#allocation2 + $0x88] sm:$0xff] %v997
    %1062 = vst [vmem:[#allocation2 + $0x90] sm:$0xff] %v998
    %1063 = vst [vmem:[#allocation2 + $0x98] sm:$0xff] %v999
    %1064 = vst [vmem:[#allocation2 + $0xa0] sm:$0xff] %v1000
    %1065 = vst [vmem:[#allocation2 + $0xa8] sm:$0xff] %v1001
    %1066 = vst [vmem:[#allocation2 + $0xb0] sm:$0xff] %v1002
    %1067 = vst [vmem:[#allocation2 + $0xb8] sm:$0xff] %v1003
    %1068 = vst [vmem:[#allocation2 + $0xc0] sm:$0xff] %v1004
    %1069 = vst [vmem:[#allocation2 + $0xc8] sm:$0xff] %v1005
    %1070 = vst [vmem:[#allocation2 + $0xd0] sm:$0xff] %v1006
    %1071 = vst [vmem:[#allocation2 + $0xd8] sm:$0xff] %v1007
    %1072 = vst [vmem:[#allocation2 + $0xe0] sm:$0xff] %v1008
    %1073 = vst [vmem:[#allocation2 + $0xe8] sm:$0xff] %v1009
    %1074 = vst [vmem:[#allocation2 + $0xf0] sm:$0xff] %v1010
    %1075 = vst [vmem:[#allocation2 + $0xf8] sm:$0xff] %v1011
    %1076 = vst [vmem:[#allocation2 + $0x100] sm:$0xff] %v1012
    %1077 = vst [vmem:[#allocation2 + $0x108] sm:$0xff] %v1013
    %1078 = vst [vmem:[#allocation2 + $0x110] sm:$0xff] %v1014
    %1079 = vst [vmem:[#allocation2 + $0x118] sm:$0xff] %v1015
    %1080 = vst [vmem:[#allocation2 + $0x120] sm:$0xff] %v1016
    %1081 = vst [vmem:[#allocation2 + $0x128] sm:$0xff] %v1017
    %1082 = vst [vmem:[#allocation2 + $0x130] sm:$0xff] %v1018
    %1083 = vst [vmem:[#allocation2 + $0x138] sm:$0xff] %v1019
    %1084 = vst [vmem:[#allocation2 + $0x140] sm:$0xff] %v1020
    %1085 = vst [vmem:[#allocation2 + $0x148] sm:$0xff] %v1021
    %1086 = vst [vmem:[#allocation2 + $0x150] sm:$0xff] %v1022
    %1087 = vst [vmem:[#allocation2 + $0x158] sm:$0xff] %v1023
    %1088 = vst [vmem:[#allocation2 + $0x160] sm:$0xff] %v1024
    %1089 = vst [vmem:[#allocation2 + $0x168] sm:$0xff] %v1025
    %1090 = vst [vmem:[#allocation2 + $0x170] sm:$0xff] %v1026
    %1091 = vst [vmem:[#allocation2 + $0x178] sm:$0xff] %v1027
    %1092 = vst [vmem:[#allocation2 + $0x180] sm:$0xff] %v1028
    %1093 = vst [vmem:[#allocation2 + $0x188] sm:$0xff] %v1029
    %1094 = vst [vmem:[#allocation2 + $0x190] sm:$0xff] %v1030
    %1095 = vst [vmem:[#allocation2 + $0x198] sm:$0xff] %v1031
    %1096 = vst [vmem:[#allocation2 + $0x1a0] sm:$0xff] %v1032
    %1097 = vst [vmem:[#allocation2 + $0x1a8] sm:$0xff] %v1033
    %1098 = vst [vmem:[#allocation2 + $0x1b0] sm:$0xff] %v1034
    %1099 = vst [vmem:[#allocation2 + $0x1b8] sm:$0xff] %v1035
    %1100 = vst [vmem:[#allocation2 + $0x1c0] sm:$0xff] %v1036
    %1101 = vst [vmem:[#allocation2 + $0x1c8] sm:$0xff] %v1037
    %1102 = vst [vmem:[#allocation2 + $0x1d0] sm:$0xff] %v1038
    %1103 = vst [vmem:[#allocation2 + $0x1d8] sm:$0xff] %v1039
    %1104 = vst [vmem:[#allocation2 + $0x1e0] sm:$0xff] %v1040
    %1105 = vst [vmem:[#allocation2 + $0x1e8] sm:$0xff] %v1041
    %1106 = vst [vmem:[#allocation2 + $0x1f0] sm:$0xff] %v1042
    %1107 = vst [vmem:[#allocation2 + $0x1f8] sm:$0xff] %v1043
    // Predicated region
    $region30: #{tpu_custom_call.1} parent=1 // pred_check
      %p1108 = pneg %p47
    $region31: #{tpu_custom_call.1} parent=1 // pred_check_branch
      %1110 = sbr.rel (%p1108) target = $region33
    $region32: #{tpu_custom_call.1} parent=1 // pred_region
      %v1111 = vld [vmem:[#allocation2] sm:$0xff]
      %v1112 = vld [vmem:[#allocation2 + $0x8] sm:$0xff]
      %v1113 = vld [vmem:[#allocation2 + $0x10] sm:$0xff]
      %v1114 = vld [vmem:[#allocation2 + $0x18] sm:$0xff]
      %v1115 = vld [vmem:[#allocation2 + $0x20] sm:$0xff]
      %v1116 = vld [vmem:[#allocation2 + $0x28] sm:$0xff]
      %v1117 = vld [vmem:[#allocation2 + $0x30] sm:$0xff]
      %v1118 = vld [vmem:[#allocation2 + $0x38] sm:$0xff]
      %v1119 = vld [vmem:[#allocation2 + $0x40] sm:$0xff]
      %v1120 = vld [vmem:[#allocation2 + $0x48] sm:$0xff]
      %v1121 = vld [vmem:[#allocation2 + $0x50] sm:$0xff]
      %v1122 = vld [vmem:[#allocation2 + $0x58] sm:$0xff]
      %v1123 = vld [vmem:[#allocation2 + $0x60] sm:$0xff]
      %v1124 = vld [vmem:[#allocation2 + $0x68] sm:$0xff]
      %v1125 = vld [vmem:[#allocation2 + $0x70] sm:$0xff]
      %v1126 = vld [vmem:[#allocation2 + $0x78] sm:$0xff]
      %v1127 = vld [vmem:[#allocation2 + $0x80] sm:$0xff]
      %v1128 = vld [vmem:[#allocation2 + $0x88] sm:$0xff]
      %v1129 = vld [vmem:[#allocation2 + $0x90] sm:$0xff]
      %v1130 = vld [vmem:[#allocation2 + $0x98] sm:$0xff]
      %v1131 = vld [vmem:[#allocation2 + $0xa0] sm:$0xff]
      %v1132 = vld [vmem:[#allocation2 + $0xa8] sm:$0xff]
      %v1133 = vld [vmem:[#allocation2 + $0xb0] sm:$0xff]
      %v1134 = vld [vmem:[#allocation2 + $0xb8] sm:$0xff]
      %v1135 = vld [vmem:[#allocation2 + $0xc0] sm:$0xff]
      %v1136 = vld [vmem:[#allocation2 + $0xc8] sm:$0xff]
      %v1137 = vld [vmem:[#allocation2 + $0xd0] sm:$0xff]
      %v1138 = vld [vmem:[#allocation2 + $0xd8] sm:$0xff]
      %v1139 = vld [vmem:[#allocation2 + $0xe0] sm:$0xff]
      %v1140 = vld [vmem:[#allocation2 + $0xe8] sm:$0xff]
      %v1141 = vld [vmem:[#allocation2 + $0xf0] sm:$0xff]
      %v1142 = vld [vmem:[#allocation2 + $0xf8] sm:$0xff]
      %v1143 = vld [vmem:[#allocation2 + $0x100] sm:$0xff]
      %v1144 = vld [vmem:[#allocation2 + $0x108] sm:$0xff]
      %v1145 = vld [vmem:[#allocation2 + $0x110] sm:$0xff]
      %v1146 = vld [vmem:[#allocation2 + $0x118] sm:$0xff]
      %v1147 = vld [vmem:[#allocation2 + $0x120] sm:$0xff]
      %v1148 = vld [vmem:[#allocation2 + $0x128] sm:$0xff]
      %v1149 = vld [vmem:[#allocation2 + $0x130] sm:$0xff]
      %v1150 = vld [vmem:[#allocation2 + $0x138] sm:$0xff]
      %v1151 = vld [vmem:[#allocation2 + $0x140] sm:$0xff]
      %v1152 = vld [vmem:[#allocation2 + $0x148] sm:$0xff]
      %v1153 = vld [vmem:[#allocation2 + $0x150] sm:$0xff]
      %v1154 = vld [vmem:[#allocation2 + $0x158] sm:$0xff]
      %v1155 = vld [vmem:[#allocation2 + $0x160] sm:$0xff]
      %v1156 = vld [vmem:[#allocation2 + $0x168] sm:$0xff]
      %v1157 = vld [vmem:[#allocation2 + $0x170] sm:$0xff]
      %v1158 = vld [vmem:[#allocation2 + $0x178] sm:$0xff]
      %v1159 = vld [vmem:[#allocation2 + $0x180] sm:$0xff]
      %v1160 = vld [vmem:[#allocation2 + $0x188] sm:$0xff]
      %v1161 = vld [vmem:[#allocation2 + $0x190] sm:$0xff]
      %v1162 = vld [vmem:[#allocation2 + $0x198] sm:$0xff]
      %v1163 = vld [vmem:[#allocation2 + $0x1a0] sm:$0xff]
      %v1164 = vld [vmem:[#allocation2 + $0x1a8] sm:$0xff]
      %v1165 = vld [vmem:[#allocation2 + $0x1b0] sm:$0xff]
      %v1166 = vld [vmem:[#allocation2 + $0x1b8] sm:$0xff]
      %v1167 = vld [vmem:[#allocation2 + $0x1c0] sm:$0xff]
      %v1168 = vld [vmem:[#allocation2 + $0x1c8] sm:$0xff]
      %v1169 = vld [vmem:[#allocation2 + $0x1d0] sm:$0xff]
      %v1170 = vld [vmem:[#allocation2 + $0x1d8] sm:$0xff]
      %v1171 = vld [vmem:[#allocation2 + $0x1e0] sm:$0xff]
      %v1172 = vld [vmem:[#allocation2 + $0x1e8] sm:$0xff]
      %v1173 = vld [vmem:[#allocation2 + $0x1f0] sm:$0xff]
      %v1174 = vld [vmem:[#allocation2 + $0x1f8] sm:$0xff]
      %v1175 = vadd.f32 %v1111, %v1112
      %v1176 = vadd.f32 %v1175, %v1113
      %v1177 = vadd.f32 %v1176, %v1114
      %v1178 = vadd.f32 %v1177, %v1115
      %v1179 = vadd.f32 %v1178, %v1116
      %v1180 = vadd.f32 %v1179, %v1117
      %v1181 = vadd.f32 %v1180, %v1118
      %v1182 = vadd.f32 %v1181, %v1119
      %v1183 = vadd.f32 %v1182, %v1120
      %v1184 = vadd.f32 %v1183, %v1121
      %v1185 = vadd.f32 %v1184, %v1122
      %v1186 = vadd.f32 %v1185, %v1123
      %v1187 = vadd.f32 %v1186, %v1124
      %v1188 = vadd.f32 %v1187, %v1125
      %v1189 = vadd.f32 %v1188, %v1126
      %v1190 = vadd.f32 %v1189, %v1127
      %v1191 = vadd.f32 %v1190, %v1128
      %v1192 = vadd.f32 %v1191, %v1129
      %v1193 = vadd.f32 %v1192, %v1130
      %v1194 = vadd.f32 %v1193, %v1131
      %v1195 = vadd.f32 %v1194, %v1132
      %v1196 = vadd.f32 %v1195, %v1133
      %v1197 = vadd.f32 %v1196, %v1134
      %v1198 = vadd.f32 %v1197, %v1135
      %v1199 = vadd.f32 %v1198, %v1136
      %v1200 = vadd.f32 %v1199, %v1137
      %v1201 = vadd.f32 %v1200, %v1138
      %v1202 = vadd.f32 %v1201, %v1139
      %v1203 = vadd.f32 %v1202, %v1140
      %v1204 = vadd.f32 %v1203, %v1141
      %v1205 = vadd.f32 %v1204, %v1142
      %v1206 = vadd.f32 %v1205, %v1143
      %v1207 = vadd.f32 %v1206, %v1144
      %v1208 = vadd.f32 %v1207, %v1145
      %v1209 = vadd.f32 %v1208, %v1146
      %v1210 = vadd.f32 %v1209, %v1147
      %v1211 = vadd.f32 %v1210, %v1148
      %v1212 = vadd.f32 %v1211, %v1149
      %v1213 = vadd.f32 %v1212, %v1150
      %v1214 = vadd.f32 %v1213, %v1151
      %v1215 = vadd.f32 %v1214, %v1152
      %v1216 = vadd.f32 %v1215, %v1153
      %v1217 = vadd.f32 %v1216, %v1154
      %v1218 = vadd.f32 %v1217, %v1155
      %v1219 = vadd.f32 %v1218, %v1156
      %v1220 = vadd.f32 %v1219, %v1157
      %v1221 = vadd.f32 %v1220, %v1158
      %v1222 = vadd.f32 %v1221, %v1159
      %v1223 = vadd.f32 %v1222, %v1160
      %v1224 = vadd.f32 %v1223, %v1161
      %v1225 = vadd.f32 %v1224, %v1162
      %v1226 = vadd.f32 %v1225, %v1163
      %v1227 = vadd.f32 %v1226, %v1164
      %v1228 = vadd.f32 %v1227, %v1165
      %v1229 = vadd.f32 %v1228, %v1166
      %v1230 = vadd.f32 %v1229, %v1167
      %v1231 = vadd.f32 %v1230, %v1168
      %v1232 = vadd.f32 %v1231, %v1169
      %v1233 = vadd.f32 %v1232, %v1170
      %v1234 = vadd.f32 %v1233, %v1171
      %v1235 = vadd.f32 %v1234, %v1172
      %v1236 = vadd.f32 %v1235, %v1173
      %v1237 = vadd.f32 %v1236, %v1174
      %v1238 = vrot.slane %v1237, 4
      %v1239 = vadd.f32 %v1237, %v1238
      %v1240 = vrot.slane %v1239, 2
      %v1241 = vadd.f32 %v1239, %v1240
      %v1242 = vrot.slane %v1241, 1
      %v1243 = vadd.f32 %v1241, %v1242
      %v1244 = vmul.f32 %v1111, %v1111
      %v1245 = vmul.f32 %v1112, %v1112
      %v1246 = vmul.f32 %v1113, %v1113
      %v1247 = vmul.f32 %v1114, %v1114
      %v1248 = vmul.f32 %v1115, %v1115
      %v1249 = vmul.f32 %v1116, %v1116
      %v1250 = vmul.f32 %v1117, %v1117
      %v1251 = vmul.f32 %v1118, %v1118
      %v1252 = vmul.f32 %v1119, %v1119
      %v1253 = vmul.f32 %v1120, %v1120
      %v1254 = vmul.f32 %v1121, %v1121
      %v1255 = vmul.f32 %v1122, %v1122
      %v1256 = vmul.f32 %v1123, %v1123
      %v1257 = vmul.f32 %v1124, %v1124
      %v1258 = vmul.f32 %v1125, %v1125
      %v1259 = vmul.f32 %v1126, %v1126
      %v1260 = vmul.f32 %v1127, %v1127
      %v1261 = vmul.f32 %v1128, %v1128
      %v1262 = vmul.f32 %v1129, %v1129
      %v1263 = vmul.f32 %v1130, %v1130
      %v1264 = vmul.f32 %v1131, %v1131
      %v1265 = vmul.f32 %v1132, %v1132
      %v1266 = vmul.f32 %v1133, %v1133
      %v1267 = vmul.f32 %v1134, %v1134
      %v1268 = vmul.f32 %v1135, %v1135
      %v1269 = vmul.f32 %v1136, %v1136
      %v1270 = vmul.f32 %v1137, %v1137
      %v1271 = vmul.f32 %v1138, %v1138
      %v1272 = vmul.f32 %v1139, %v1139
      %v1273 = vmul.f32 %v1140, %v1140
      %v1274 = vmul.f32 %v1141, %v1141
      %v1275 = vmul.f32 %v1142, %v1142
      %v1276 = vmul.f32 %v1143, %v1143
      %v1277 = vmul.f32 %v1144, %v1144
      %v1278 = vmul.f32 %v1145, %v1145
      %v1279 = vmul.f32 %v1146, %v1146
      %v1280 = vmul.f32 %v1147, %v1147
      %v1281 = vmul.f32 %v1148, %v1148
      %v1282 = vmul.f32 %v1149, %v1149
      %v1283 = vmul.f32 %v1150, %v1150
      %v1284 = vmul.f32 %v1151, %v1151
      %v1285 = vmul.f32 %v1152, %v1152
      %v1286 = vmul.f32 %v1153, %v1153
      %v1287 = vmul.f32 %v1154, %v1154
      %v1288 = vmul.f32 %v1155, %v1155
      %v1289 = vmul.f32 %v1156, %v1156
      %v1290 = vmul.f32 %v1157, %v1157
      %v1291 = vmul.f32 %v1158, %v1158
      %v1292 = vmul.f32 %v1159, %v1159
      %v1293 = vmul.f32 %v1160, %v1160
      %v1294 = vmul.f32 %v1161, %v1161
      %v1295 = vmul.f32 %v1162, %v1162
      %v1296 = vmul.f32 %v1163, %v1163
      %v1297 = vmul.f32 %v1164, %v1164
      %v1298 = vmul.f32 %v1165, %v1165
      %v1299 = vmul.f32 %v1166, %v1166
      %v1300 = vmul.f32 %v1167, %v1167
      %v1301 = vmul.f32 %v1168, %v1168
      %v1302 = vmul.f32 %v1169, %v1169
      %v1303 = vmul.f32 %v1170, %v1170
      %v1304 = vmul.f32 %v1171, %v1171
      %v1305 = vmul.f32 %v1172, %v1172
      %v1306 = vmul.f32 %v1173, %v1173
      %v1307 = vmul.f32 %v1174, %v1174
      %v1308 = vadd.f32 %v1244, %v1245
      %v1309 = vadd.f32 %v1308, %v1246
      %v1310 = vadd.f32 %v1309, %v1247
      %v1311 = vadd.f32 %v1310, %v1248
      %v1312 = vadd.f32 %v1311, %v1249
      %v1313 = vadd.f32 %v1312, %v1250
      %v1314 = vadd.f32 %v1313, %v1251
      %v1315 = vadd.f32 %v1314, %v1252
      %v1316 = vadd.f32 %v1315, %v1253
      %v1317 = vadd.f32 %v1316, %v1254
      %v1318 = vadd.f32 %v1317, %v1255
      %v1319 = vadd.f32 %v1318, %v1256
      %v1320 = vadd.f32 %v1319, %v1257
      %v1321 = vadd.f32 %v1320, %v1258
      %v1322 = vadd.f32 %v1321, %v1259
      %v1323 = vadd.f32 %v1322, %v1260
      %v1324 = vadd.f32 %v1323, %v1261
      %v1325 = vadd.f32 %v1324, %v1262
      %v1326 = vadd.f32 %v1325, %v1263
      %v1327 = vadd.f32 %v1326, %v1264
      %v1328 = vadd.f32 %v1327, %v1265
      %v1329 = vadd.f32 %v1328, %v1266
      %v1330 = vadd.f32 %v1329, %v1267
      %v1331 = vadd.f32 %v1330, %v1268
      %v1332 = vadd.f32 %v1331, %v1269
      %v1333 = vadd.f32 %v1332, %v1270
      %v1334 = vadd.f32 %v1333, %v1271
      %v1335 = vadd.f32 %v1334, %v1272
      %v1336 = vadd.f32 %v1335, %v1273
      %v1337 = vadd.f32 %v1336, %v1274
      %v1338 = vadd.f32 %v1337, %v1275
      %v1339 = vadd.f32 %v1338, %v1276
      %v1340 = vadd.f32 %v1339, %v1277
      %v1341 = vadd.f32 %v1340, %v1278
      %v1342 = vadd.f32 %v1341, %v1279
      %v1343 = vadd.f32 %v1342, %v1280
      %v1344 = vadd.f32 %v1343, %v1281
      %v1345 = vadd.f32 %v1344, %v1282
      %v1346 = vadd.f32 %v1345, %v1283
      %v1347 = vadd.f32 %v1346, %v1284
      %v1348 = vadd.f32 %v1347, %v1285
      %v1349 = vadd.f32 %v1348, %v1286
      %v1350 = vadd.f32 %v1349, %v1287
      %v1351 = vadd.f32 %v1350, %v1288
      %v1352 = vadd.f32 %v1351, %v1289
      %v1353 = vadd.f32 %v1352, %v1290
      %v1354 = vadd.f32 %v1353, %v1291
      %v1355 = vadd.f32 %v1354, %v1292
      %v1356 = vadd.f32 %v1355, %v1293
      %v1357 = vadd.f32 %v1356, %v1294
      %v1358 = vadd.f32 %v1357, %v1295
      %v1359 = vadd.f32 %v1358, %v1296
      %v1360 = vadd.f32 %v1359, %v1297
      %v1361 = vadd.f32 %v1360, %v1298
      %v1362 = vadd.f32 %v1361, %v1299
      %v1363 = vadd.f32 %v1362, %v1300
      %v1364 = vadd.f32 %v1363, %v1301
      %v1365 = vadd.f32 %v1364, %v1302
      %v1366 = vadd.f32 %v1365, %v1303
      %v1367 = vadd.f32 %v1366, %v1304
      %v1368 = vadd.f32 %v1367, %v1305
      %v1369 = vadd.f32 %v1368, %v1306
      %v1370 = vadd.f32 %v1369, %v1307
      %v1371 = vrot.slane %v1370, 4
      %v1372 = vadd.f32 %v1370, %v1371
      %v1373 = vrot.slane %v1372, 2
      %v1374 = vadd.f32 %v1372, %v1373
      %v1375 = vrot.slane %v1374, 1
      %v1376 = vadd.f32 %v1374, %v1375
      %v1377 = vmul.f32 %v1243, 0.001953125
      %v1378 = vmul.f32 %v1376, 0.001953125
      %v1379 = vmul.f32 %v1377, %v1377
      %v1380 = vsub.f32 %v1378, %v1379
      %v1381 = vmax.f32 %v1380, 0.0
      %v1382 = vsub.f32 %v1111, %v1377
      %v1383 = vsub.f32 %v1112, %v1377
      %v1384 = vsub.f32 %v1113, %v1377
      %v1385 = vsub.f32 %v1114, %v1377
      %v1386 = vsub.f32 %v1115, %v1377
      %v1387 = vsub.f32 %v1116, %v1377
      %v1388 = vsub.f32 %v1117, %v1377
      %v1389 = vsub.f32 %v1118, %v1377
      %v1390 = vsub.f32 %v1119, %v1377
      %v1391 = vsub.f32 %v1120, %v1377
      %v1392 = vsub.f32 %v1121, %v1377
      %v1393 = vsub.f32 %v1122, %v1377
      %v1394 = vsub.f32 %v1123, %v1377
      %v1395 = vsub.f32 %v1124, %v1377
      %v1396 = vsub.f32 %v1125, %v1377
      %v1397 = vsub.f32 %v1126, %v1377
      %v1398 = vsub.f32 %v1127, %v1377
      %v1399 = vsub.f32 %v1128, %v1377
      %v1400 = vsub.f32 %v1129, %v1377
      %v1401 = vsub.f32 %v1130, %v1377
      %v1402 = vsub.f32 %v1131, %v1377
      %v1403 = vsub.f32 %v1132, %v1377
      %v1404 = vsub.f32 %v1133, %v1377
      %v1405 = vsub.f32 %v1134, %v1377
      %v1406 = vsub.f32 %v1135, %v1377
      %v1407 = vsub.f32 %v1136, %v1377
      %v1408 = vsub.f32 %v1137, %v1377
      %v1409 = vsub.f32 %v1138, %v1377
      %v1410 = vsub.f32 %v1139, %v1377
      %v1411 = vsub.f32 %v1140, %v1377
      %v1412 = vsub.f32 %v1141, %v1377
      %v1413 = vsub.f32 %v1142, %v1377
      %v1414 = vsub.f32 %v1143, %v1377
      %v1415 = vsub.f32 %v1144, %v1377
      %v1416 = vsub.f32 %v1145, %v1377
      %v1417 = vsub.f32 %v1146, %v1377
      %v1418 = vsub.f32 %v1147, %v1377
      %v1419 = vsub.f32 %v1148, %v1377
      %v1420 = vsub.f32 %v1149, %v1377
      %v1421 = vsub.f32 %v1150, %v1377
      %v1422 = vsub.f32 %v1151, %v1377
      %v1423 = vsub.f32 %v1152, %v1377
      %v1424 = vsub.f32 %v1153, %v1377
      %v1425 = vsub.f32 %v1154, %v1377
      %v1426 = vsub.f32 %v1155, %v1377
      %v1427 = vsub.f32 %v1156, %v1377
      %v1428 = vsub.f32 %v1157, %v1377
      %v1429 = vsub.f32 %v1158, %v1377
      %v1430 = vsub.f32 %v1159, %v1377
      %v1431 = vsub.f32 %v1160, %v1377
      %v1432 = vsub.f32 %v1161, %v1377
      %v1433 = vsub.f32 %v1162, %v1377
      %v1434 = vsub.f32 %v1163, %v1377
      %v1435 = vsub.f32 %v1164, %v1377
      %v1436 = vsub.f32 %v1165, %v1377
      %v1437 = vsub.f32 %v1166, %v1377
      %v1438 = vsub.f32 %v1167, %v1377
      %v1439 = vsub.f32 %v1168, %v1377
      %v1440 = vsub.f32 %v1169, %v1377
      %v1441 = vsub.f32 %v1170, %v1377
      %v1442 = vsub.f32 %v1171, %v1377
      %v1443 = vsub.f32 %v1172, %v1377
      %v1444 = vsub.f32 %v1173, %v1377
      %v1445 = vsub.f32 %v1174, %v1377
      %v1446 = vadd.f32 %v1381, 1e-05
      %v1447 = vrsqrt.pop %v1446
      %v1448 = vmul.f32 %v1382, %v1447
      %v1449 = vmul.f32 %v1383, %v1447
      %v1450 = vmul.f32 %v1384, %v1447
      %v1451 = vmul.f32 %v1385, %v1447
      %v1452 = vmul.f32 %v1386, %v1447
      %v1453 = vmul.f32 %v1387, %v1447
      %v1454 = vmul.f32 %v1388, %v1447
      %v1455 = vmul.f32 %v1389, %v1447
      %v1456 = vmul.f32 %v1390, %v1447
      %v1457 = vmul.f32 %v1391, %v1447
      %v1458 = vmul.f32 %v1392, %v1447
      %v1459 = vmul.f32 %v1393, %v1447
      %v1460 = vmul.f32 %v1394, %v1447
      %v1461 = vmul.f32 %v1395, %v1447
      %v1462 = vmul.f32 %v1396, %v1447
      %v1463 = vmul.f32 %v1397, %v1447
      %v1464 = vmul.f32 %v1398, %v1447
      %v1465 = vmul.f32 %v1399, %v1447
      %v1466 = vmul.f32 %v1400, %v1447
      %v1467 = vmul.f32 %v1401, %v1447
      %v1468 = vmul.f32 %v1402, %v1447
      %v1469 = vmul.f32 %v1403, %v1447
      %v1470 = vmul.f32 %v1404, %v1447
      %v1471 = vmul.f32 %v1405, %v1447
      %v1472 = vmul.f32 %v1406, %v1447
      %v1473 = vmul.f32 %v1407, %v1447
      %v1474 = vmul.f32 %v1408, %v1447
      %v1475 = vmul.f32 %v1409, %v1447
      %v1476 = vmul.f32 %v1410, %v1447
      %v1477 = vmul.f32 %v1411, %v1447
      %v1478 = vmul.f32 %v1412, %v1447
      %v1479 = vmul.f32 %v1413, %v1447
      %v1480 = vmul.f32 %v1414, %v1447
      %v1481 = vmul.f32 %v1415, %v1447
      %v1482 = vmul.f32 %v1416, %v1447
      %v1483 = vmul.f32 %v1417, %v1447
      %v1484 = vmul.f32 %v1418, %v1447
      %v1485 = vmul.f32 %v1419, %v1447
      %v1486 = vmul.f32 %v1420, %v1447
      %v1487 = vmul.f32 %v1421, %v1447
      %v1488 = vmul.f32 %v1422, %v1447
      %v1489 = vmul.f32 %v1423, %v1447
      %v1490 = vmul.f32 %v1424, %v1447
      %v1491 = vmul.f32 %v1425, %v1447
      %v1492 = vmul.f32 %v1426, %v1447
      %v1493 = vmul.f32 %v1427, %v1447
      %v1494 = vmul.f32 %v1428, %v1447
      %v1495 = vmul.f32 %v1429, %v1447
      %v1496 = vmul.f32 %v1430, %v1447
      %v1497 = vmul.f32 %v1431, %v1447
      %v1498 = vmul.f32 %v1432, %v1447
      %v1499 = vmul.f32 %v1433, %v1447
      %v1500 = vmul.f32 %v1434, %v1447
      %v1501 = vmul.f32 %v1435, %v1447
      %v1502 = vmul.f32 %v1436, %v1447
      %v1503 = vmul.f32 %v1437, %v1447
      %v1504 = vmul.f32 %v1438, %v1447
      %v1505 = vmul.f32 %v1439, %v1447
      %v1506 = vmul.f32 %v1440, %v1447
      %v1507 = vmul.f32 %v1441, %v1447
      %v1508 = vmul.f32 %v1442, %v1447
      %v1509 = vmul.f32 %v1443, %v1447
      %v1510 = vmul.f32 %v1444, %v1447
      %v1511 = vmul.f32 %v1445, %v1447
      %v1512 = vld [vmem:[%s2] sm:$0x1]
      %v1514 = vlaneseq
      %v1515 = vshrl.u32 %v1514, 7
      %v1516 = vsub.s32 0, %v1515
      %v1517 = vrot.slane %v1512, %v1516
      %v1519 = vmul.f32 %v1448, %v1517
      %v1520 = vmul.f32 %v1449, %v1517
      %v1521 = vmul.f32 %v1450, %v1517
      %v1522 = vmul.f32 %v1451, %v1517
      %v1523 = vmul.f32 %v1452, %v1517
      %v1524 = vmul.f32 %v1453, %v1517
      %v1525 = vmul.f32 %v1454, %v1517
      %v1526 = vmul.f32 %v1455, %v1517
      %v1527 = vmul.f32 %v1456, %v1517
      %v1528 = vmul.f32 %v1457, %v1517
      %v1529 = vmul.f32 %v1458, %v1517
      %v1530 = vmul.f32 %v1459, %v1517
      %v1531 = vmul.f32 %v1460, %v1517
      %v1532 = vmul.f32 %v1461, %v1517
      %v1533 = vmul.f32 %v1462, %v1517
      %v1534 = vmul.f32 %v1463, %v1517
      %v1535 = vmul.f32 %v1464, %v1517
      %v1536 = vmul.f32 %v1465, %v1517
      %v1537 = vmul.f32 %v1466, %v1517
      %v1538 = vmul.f32 %v1467, %v1517
      %v1539 = vmul.f32 %v1468, %v1517
      %v1540 = vmul.f32 %v1469, %v1517
      %v1541 = vmul.f32 %v1470, %v1517
      %v1542 = vmul.f32 %v1471, %v1517
      %v1543 = vmul.f32 %v1472, %v1517
      %v1544 = vmul.f32 %v1473, %v1517
      %v1545 = vmul.f32 %v1474, %v1517
      %v1546 = vmul.f32 %v1475, %v1517
      %v1547 = vmul.f32 %v1476, %v1517
      %v1548 = vmul.f32 %v1477, %v1517
      %v1549 = vmul.f32 %v1478, %v1517
      %v1550 = vmul.f32 %v1479, %v1517
      %v1551 = vmul.f32 %v1480, %v1517
      %v1552 = vmul.f32 %v1481, %v1517
      %v1553 = vmul.f32 %v1482, %v1517
      %v1554 = vmul.f32 %v1483, %v1517
      %v1555 = vmul.f32 %v1484, %v1517
      %v1556 = vmul.f32 %v1485, %v1517
      %v1557 = vmul.f32 %v1486, %v1517
      %v1558 = vmul.f32 %v1487, %v1517
      %v1559 = vmul.f32 %v1488, %v1517
      %v1560 = vmul.f32 %v1489, %v1517
      %v1561 = vmul.f32 %v1490, %v1517
      %v1562 = vmul.f32 %v1491, %v1517
      %v1563 = vmul.f32 %v1492, %v1517
      %v1564 = vmul.f32 %v1493, %v1517
      %v1565 = vmul.f32 %v1494, %v1517
      %v1566 = vmul.f32 %v1495, %v1517
      %v1567 = vmul.f32 %v1496, %v1517
      %v1568 = vmul.f32 %v1497, %v1517
      %v1569 = vmul.f32 %v1498, %v1517
      %v1570 = vmul.f32 %v1499, %v1517
      %v1571 = vmul.f32 %v1500, %v1517
      %v1572 = vmul.f32 %v1501, %v1517
      %v1573 = vmul.f32 %v1502, %v1517
      %v1574 = vmul.f32 %v1503, %v1517
      %v1575 = vmul.f32 %v1504, %v1517
      %v1576 = vmul.f32 %v1505, %v1517
      %v1577 = vmul.f32 %v1506, %v1517
      %v1578 = vmul.f32 %v1507, %v1517
      %v1579 = vmul.f32 %v1508, %v1517
      %v1580 = vmul.f32 %v1509, %v1517
      %v1581 = vmul.f32 %v1510, %v1517
      %v1582 = vmul.f32 %v1511, %v1517
      %v1583 = vld [vmem:[%s3] sm:$0x1]
      %v1585 = vlaneseq
      %v1586 = vshrl.u32 %v1585, 7
      %v1587 = vsub.s32 0, %v1586
      %v1588 = vrot.slane %v1583, %v1587
      %v1590 = vadd.f32 %v1519, %v1588
      %v1591 = vadd.f32 %v1520, %v1588
      %v1592 = vadd.f32 %v1521, %v1588
      %v1593 = vadd.f32 %v1522, %v1588
      %v1594 = vadd.f32 %v1523, %v1588
      %v1595 = vadd.f32 %v1524, %v1588
      %v1596 = vadd.f32 %v1525, %v1588
      %v1597 = vadd.f32 %v1526, %v1588
      %v1598 = vadd.f32 %v1527, %v1588
      %v1599 = vadd.f32 %v1528, %v1588
      %v1600 = vadd.f32 %v1529, %v1588
      %v1601 = vadd.f32 %v1530, %v1588
      %v1602 = vadd.f32 %v1531, %v1588
      %v1603 = vadd.f32 %v1532, %v1588
      %v1604 = vadd.f32 %v1533, %v1588
      %v1605 = vadd.f32 %v1534, %v1588
      %v1606 = vadd.f32 %v1535, %v1588
      %v1607 = vadd.f32 %v1536, %v1588
      %v1608 = vadd.f32 %v1537, %v1588
      %v1609 = vadd.f32 %v1538, %v1588
      %v1610 = vadd.f32 %v1539, %v1588
      %v1611 = vadd.f32 %v1540, %v1588
      %v1612 = vadd.f32 %v1541, %v1588
      %v1613 = vadd.f32 %v1542, %v1588
      %v1614 = vadd.f32 %v1543, %v1588
      %v1615 = vadd.f32 %v1544, %v1588
      %v1616 = vadd.f32 %v1545, %v1588
      %v1617 = vadd.f32 %v1546, %v1588
      %v1618 = vadd.f32 %v1547, %v1588
      %v1619 = vadd.f32 %v1548, %v1588
      %v1620 = vadd.f32 %v1549, %v1588
      %v1621 = vadd.f32 %v1550, %v1588
      %v1622 = vadd.f32 %v1551, %v1588
      %v1623 = vadd.f32 %v1552, %v1588
      %v1624 = vadd.f32 %v1553, %v1588
      %v1625 = vadd.f32 %v1554, %v1588
      %v1626 = vadd.f32 %v1555, %v1588
      %v1627 = vadd.f32 %v1556, %v1588
      %v1628 = vadd.f32 %v1557, %v1588
      %v1629 = vadd.f32 %v1558, %v1588
      %v1630 = vadd.f32 %v1559, %v1588
      %v1631 = vadd.f32 %v1560, %v1588
      %v1632 = vadd.f32 %v1561, %v1588
      %v1633 = vadd.f32 %v1562, %v1588
      %v1634 = vadd.f32 %v1563, %v1588
      %v1635 = vadd.f32 %v1564, %v1588
      %v1636 = vadd.f32 %v1565, %v1588
      %v1637 = vadd.f32 %v1566, %v1588
      %v1638 = vadd.f32 %v1567, %v1588
      %v1639 = vadd.f32 %v1568, %v1588
      %v1640 = vadd.f32 %v1569, %v1588
      %v1641 = vadd.f32 %v1570, %v1588
      %v1642 = vadd.f32 %v1571, %v1588
      %v1643 = vadd.f32 %v1572, %v1588
      %v1644 = vadd.f32 %v1573, %v1588
      %v1645 = vadd.f32 %v1574, %v1588
      %v1646 = vadd.f32 %v1575, %v1588
      %v1647 = vadd.f32 %v1576, %v1588
      %v1648 = vadd.f32 %v1577, %v1588
      %v1649 = vadd.f32 %v1578, %v1588
      %v1650 = vadd.f32 %v1579, %v1588
      %v1651 = vadd.f32 %v1580, %v1588
      %v1652 = vadd.f32 %v1581, %v1588
      %v1653 = vadd.f32 %v1582, %v1588
      %v1654 = vmax.f32 %v1590, 0.0
      %v1655 = vmax.f32 %v1591, 0.0
      %v1656 = vmax.f32 %v1592, 0.0
      %v1657 = vmax.f32 %v1593, 0.0
      %v1658 = vmax.f32 %v1594, 0.0
      %v1659 = vmax.f32 %v1595, 0.0
      %v1660 = vmax.f32 %v1596, 0.0
      %v1661 = vmax.f32 %v1597, 0.0
      %v1662 = vmax.f32 %v1598, 0.0
      %v1663 = vmax.f32 %v1599, 0.0
      %v1664 = vmax.f32 %v1600, 0.0
      %v1665 = vmax.f32 %v1601, 0.0
      %v1666 = vmax.f32 %v1602, 0.0
      %v1667 = vmax.f32 %v1603, 0.0
      %v1668 = vmax.f32 %v1604, 0.0
      %v1669 = vmax.f32 %v1605, 0.0
      %v1670 = vmax.f32 %v1606, 0.0
      %v1671 = vmax.f32 %v1607, 0.0
      %v1672 = vmax.f32 %v1608, 0.0
      %v1673 = vmax.f32 %v1609, 0.0
      %v1674 = vmax.f32 %v1610, 0.0
      %v1675 = vmax.f32 %v1611, 0.0
      %v1676 = vmax.f32 %v1612, 0.0
      %v1677 = vmax.f32 %v1613, 0.0
      %v1678 = vmax.f32 %v1614, 0.0
      %v1679 = vmax.f32 %v1615, 0.0
      %v1680 = vmax.f32 %v1616, 0.0
      %v1681 = vmax.f32 %v1617, 0.0
      %v1682 = vmax.f32 %v1618, 0.0
      %v1683 = vmax.f32 %v1619, 0.0
      %v1684 = vmax.f32 %v1620, 0.0
      %v1685 = vmax.f32 %v1621, 0.0
      %v1686 = vmax.f32 %v1622, 0.0
      %v1687 = vmax.f32 %v1623, 0.0
      %v1688 = vmax.f32 %v1624, 0.0
      %v1689 = vmax.f32 %v1625, 0.0
      %v1690 = vmax.f32 %v1626, 0.0
      %v1691 = vmax.f32 %v1627, 0.0
      %v1692 = vmax.f32 %v1628, 0.0
      %v1693 = vmax.f32 %v1629, 0.0
      %v1694 = vmax.f32 %v1630, 0.0
      %v1695 = vmax.f32 %v1631, 0.0
      %v1696 = vmax.f32 %v1632, 0.0
      %v1697 = vmax.f32 %v1633, 0.0
      %v1698 = vmax.f32 %v1634, 0.0
      %v1699 = vmax.f32 %v1635, 0.0
      %v1700 = vmax.f32 %v1636, 0.0
      %v1701 = vmax.f32 %v1637, 0.0
      %v1702 = vmax.f32 %v1638, 0.0
      %v1703 = vmax.f32 %v1639, 0.0
      %v1704 = vmax.f32 %v1640, 0.0
      %v1705 = vmax.f32 %v1641, 0.0
      %v1706 = vmax.f32 %v1642, 0.0
      %v1707 = vmax.f32 %v1643, 0.0
      %v1708 = vmax.f32 %v1644, 0.0
      %v1709 = vmax.f32 %v1645, 0.0
      %v1710 = vmax.f32 %v1646, 0.0
      %v1711 = vmax.f32 %v1647, 0.0
      %v1712 = vmax.f32 %v1648, 0.0
      %v1713 = vmax.f32 %v1649, 0.0
      %v1714 = vmax.f32 %v1650, 0.0
      %v1715 = vmax.f32 %v1651, 0.0
      %v1716 = vmax.f32 %v1652, 0.0
      %v1717 = vmax.f32 %v1653, 0.0
      %1718 = vst [vmem:[#allocation8] sm:$0xff] %v1654
      %1719 = vst [vmem:[#allocation8 + $0x8] sm:$0xff] %v1655
      %1720 = vst [vmem:[#allocation8 + $0x10] sm:$0xff] %v1656
      %1721 = vst [vmem:[#allocation8 + $0x18] sm:$0xff] %v1657
      %1722 = vst [vmem:[#allocation8 + $0x20] sm:$0xff] %v1658
      %1723 = vst [vmem:[#allocation8 + $0x28] sm:$0xff] %v1659
      %1724 = vst [vmem:[#allocation8 + $0x30] sm:$0xff] %v1660
      %1725 = vst [vmem:[#allocation8 + $0x38] sm:$0xff] %v1661
      %1726 = vst [vmem:[#allocation8 + $0x40] sm:$0xff] %v1662
      %1727 = vst [vmem:[#allocation8 + $0x48] sm:$0xff] %v1663
      %1728 = vst [vmem:[#allocation8 + $0x50] sm:$0xff] %v1664
      %1729 = vst [vmem:[#allocation8 + $0x58] sm:$0xff] %v1665
      %1730 = vst [vmem:[#allocation8 + $0x60] sm:$0xff] %v1666
      %1731 = vst [vmem:[#allocation8 + $0x68] sm:$0xff] %v1667
      %1732 = vst [vmem:[#allocation8 + $0x70] sm:$0xff] %v1668
      %1733 = vst [vmem:[#allocation8 + $0x78] sm:$0xff] %v1669
      %1734 = vst [vmem:[#allocation8 + $0x80] sm:$0xff] %v1670
      %1735 = vst [vmem:[#allocation8 + $0x88] sm:$0xff] %v1671
      %1736 = vst [vmem:[#allocation8 + $0x90] sm:$0xff] %v1672
      %1737 = vst [vmem:[#allocation8 + $0x98] sm:$0xff] %v1673
      %1738 = vst [vmem:[#allocation8 + $0xa0] sm:$0xff] %v1674
      %1739 = vst [vmem:[#allocation8 + $0xa8] sm:$0xff] %v1675
      %1740 = vst [vmem:[#allocation8 + $0xb0] sm:$0xff] %v1676
      %1741 = vst [vmem:[#allocation8 + $0xb8] sm:$0xff] %v1677
      %1742 = vst [vmem:[#allocation8 + $0xc0] sm:$0xff] %v1678
      %1743 = vst [vmem:[#allocation8 + $0xc8] sm:$0xff] %v1679
      %1744 = vst [vmem:[#allocation8 + $0xd0] sm:$0xff] %v1680
      %1745 = vst [vmem:[#allocation8 + $0xd8] sm:$0xff] %v1681
      %1746 = vst [vmem:[#allocation8 + $0xe0] sm:$0xff] %v1682
      %1747 = vst [vmem:[#allocation8 + $0xe8] sm:$0xff] %v1683
      %1748 = vst [vmem:[#allocation8 + $0xf0] sm:$0xff] %v1684
      %1749 = vst [vmem:[#allocation8 + $0xf8] sm:$0xff] %v1685
      %1750 = vst [vmem:[#allocation8 + $0x100] sm:$0xff] %v1686
      %1751 = vst [vmem:[#allocation8 + $0x108] sm:$0xff] %v1687
      %1752 = vst [vmem:[#allocation8 + $0x110] sm:$0xff] %v1688
      %1753 = vst [vmem:[#allocation8 + $0x118] sm:$0xff] %v1689
      %1754 = vst [vmem:[#allocation8 + $0x120] sm:$0xff] %v1690
      %1755 = vst [vmem:[#allocation8 + $0x128] sm:$0xff] %v1691
      %1756 = vst [vmem:[#allocation8 + $0x130] sm:$0xff] %v1692
      %1757 = vst [vmem:[#allocation8 + $0x138] sm:$0xff] %v1693
      %1758 = vst [vmem:[#allocation8 + $0x140] sm:$0xff] %v1694
      %1759 = vst [vmem:[#allocation8 + $0x148] sm:$0xff] %v1695
      %1760 = vst [vmem:[#allocation8 + $0x150] sm:$0xff] %v1696
      %1761 = vst [vmem:[#allocation8 + $0x158] sm:$0xff] %v1697
      %1762 = vst [vmem:[#allocation8 + $0x160] sm:$0xff] %v1698
      %1763 = vst [vmem:[#allocation8 + $0x168] sm:$0xff] %v1699
      %1764 = vst [vmem:[#allocation8 + $0x170] sm:$0xff] %v1700
      %1765 = vst [vmem:[#allocation8 + $0x178] sm:$0xff] %v1701
      %1766 = vst [vmem:[#allocation8 + $0x180] sm:$0xff] %v1702
      %1767 = vst [vmem:[#allocation8 + $0x188] sm:$0xff] %v1703
      %1768 = vst [vmem:[#allocation8 + $0x190] sm:$0xff] %v1704
      %1769 = vst [vmem:[#allocation8 + $0x198] sm:$0xff] %v1705
      %1770 = vst [vmem:[#allocation8 + $0x1a0] sm:$0xff] %v1706
      %1771 = vst [vmem:[#allocation8 + $0x1a8] sm:$0xff] %v1707
      %1772 = vst [vmem:[#allocation8 + $0x1b0] sm:$0xff] %v1708
      %1773 = vst [vmem:[#allocation8 + $0x1b8] sm:$0xff] %v1709
      %1774 = vst [vmem:[#allocation8 + $0x1c0] sm:$0xff] %v1710
      %1775 = vst [vmem:[#allocation8 + $0x1c8] sm:$0xff] %v1711
      %1776 = vst [vmem:[#allocation8 + $0x1d0] sm:$0xff] %v1712
      %1777 = vst [vmem:[#allocation8 + $0x1d8] sm:$0xff] %v1713
      %1778 = vst [vmem:[#allocation8 + $0x1e0] sm:$0xff] %v1714
      %1779 = vst [vmem:[#allocation8 + $0x1e8] sm:$0xff] %v1715
      %1780 = vst [vmem:[#allocation8 + $0x1f0] sm:$0xff] %v1716
      %1781 = vst [vmem:[#allocation8 + $0x1f8] sm:$0xff] %v1717
    $region33: #{tpu_custom_call.1} parent=1 // pred_fallthru
      _
    // Predicated region
    $region34: #{tpu_custom_call.1} parent=1 // pred_check
      _
    $region35: #{tpu_custom_call.1} parent=1 // pred_check_branch
      %1783 = sbr.rel (0) target = $region37
    $region36: #{tpu_custom_call.1} parent=1 // pred_region
      %s1785 = ssub.s32 8192, 8192
      %1786 = vsyncadd [#allocation5], %s1785
      %s1787 = sshll.u32 [#allocation8], 4
      %s1788 = int_to_ptr.vmem [resolvable:$true] %s1787
      %1793 = dma.vmem_to_hbm [thread:$0]  %s1788, 8192, %s4, [#allocation5], 128, 128, 8
    $region37: #{tpu_custom_call.1} parent=1 // pred_fallthru
      _
    // Predicated region
    $region38: #{tpu_custom_call.1} parent=1 // pred_check
      _
    $region39: #{tpu_custom_call.1} parent=1 // pred_check_branch
      %1795 = sbr.rel (0) target = $region41
    $region40: #{tpu_custom_call.1} parent=1 // pred_region
      %1796 = dma.done [#allocation5], 8192
    $region41: #{tpu_custom_call.1} parent=1 // pred_fallthru
      _
    %1797 = vsyncpa [#allocation4], 1
    %1798 = vsyncpa [#allocation7], 1
    %1799 = vsyncpa [#allocation5], 1

</llo_original>
